<compile_context>
chip_gen: v7x
topology: tpu7x:2x2x1
jax: 0.10.0
libtpu: 0.0.40
codegen_flags: <defaults>
</compile_context>

<pallas_src>
import jax
import jax.numpy as jnp
from jax import lax
from jax.experimental import pallas as pl
from jax.experimental.pallas import tpu as pltpu


def _round_up(x, m):
    return ((x + m - 1) // m) * m


# --------------------------------------------------------------------------
# Kernel 1: DMA-gather the B*C embedding rows, renorm (max_norm=1.0), mean.
# --------------------------------------------------------------------------
def _gather_mean_kernel(idx_ref, emb_hbm, mean_ref, gather_buf, sem):
    # idx_ref    : SMEM (B, C) int32   (scalar prefetch)
    # emb_hbm    : HBM  (V, D) f32     (raw ref, never copied wholesale)
    # mean_ref   : VMEM (B, D) f32     output
    # gather_buf : VMEM (C*B, D) f32   scratch, context-major (row = c*B + b)
    # sem        : DMA semaphores (C*B,)
    B, C = idx_ref.shape

    # Build every descriptor first (all idx scalar reads happen up front),
    # then issue every start before any wait: the gather prologue does not
    # interleave SMEM reads with DMA waits.
    copies = []
    for j in range(C * B):
        c_i, b_i = j // B, j % B
        row = idx_ref[b_i, c_i]
        copies.append(pltpu.make_async_copy(
            emb_hbm.at[pl.ds(row, 1), :],
            gather_buf.at[pl.ds(j, 1), :],
            sem.at[j]))
    for cp in copies:
        cp.start()
    for cp in copies:
        cp.wait()

    # max_norm=1.0 renorm on the gathered rows only (torch's renorm eps).
    g = gather_buf[...]                                     # (C*B, D)
    sumsq = jnp.sum(g * g, axis=-1, keepdims=True)
    norm = jnp.sqrt(sumsq)
    scale = jnp.where(norm > 1.0, 1.0 / (norm + 1e-7), 1.0)
    gn = g * scale

    # Mean over context (context-major layout -> static B-row slices).
    acc = gn[0:B, :]
    for c in range(1, C):
        acc = acc + gn[c * B:(c + 1) * B, :]
    mean_ref[...] = acc * (1.0 / C)                          # (B, D)


def _gather_mean(idx, emb):
    B, C = idx.shape
    V, D = emb.shape
    return pl.pallas_call(
        _gather_mean_kernel,
        out_shape=jax.ShapeDtypeStruct((B, D), jnp.float32),
        grid_spec=pltpu.PrefetchScalarGridSpec(
            num_scalar_prefetch=1,                    # idx -> SMEM
            grid=(1,),
            in_specs=[pl.BlockSpec(memory_space=pl.ANY)],   # emb stays in HBM
            out_specs=pl.BlockSpec((B, D), lambda i, idx: (0, 0)),
            scratch_shapes=[
                pltpu.VMEM((C * B, D), jnp.float32),
                pltpu.SemaphoreType.DMA((C * B,)),
            ]),
        compiler_params=pltpu.CompilerParams(
            dimension_semantics=("arbitrary",)),
    )(idx, emb)


# --------------------------------------------------------------------------
# Kernel 2: V-tiled linear: out[:, jV] = mean @ w[jV, :].T + b[jV]
# --------------------------------------------------------------------------
def _linear_kernel(mean_ref, w_ref, b_ref, out_ref):
    # mean_ref : VMEM (B, D)  f32   (same block every tile)
    # w_ref    : VMEM (tV, D) bf16  (contiguous row-block of the weight)
    # b_ref    : VMEM (1, tV) f32
    # out_ref  : VMEM (B, tV) f32   lane-dense
    m = mean_ref[...].astype(jnp.bfloat16)
    out_ref[...] = lax.dot_general(
        m, w_ref[...],
        dimension_numbers=(((1,), (1,)), ((), ())),   # contract on D
        preferred_element_type=jnp.float32) + b_ref[...]


def cbow_forward(idx, emb, w, b, *, tv=None):
    B, C = idx.shape
    V, D = emb.shape
    assert w.shape == (V, D) and b.shape == (V,)

    idx = idx.astype(jnp.int32)
    emb = jnp.asarray(emb, jnp.float32)

    # Stage 1: (B, D) context mean (tiny; HBM round-trip is negligible).
    mean = _gather_mean(idx, emb)

    # Pad vocab to a multiple of 128 so output stores stay lane-dense.
    v_pad = _round_up(V, 128)

    # Largest V tile that divides the padded vocab and keeps a weight tile
    # <= 4 MiB (double-buffered this stays tiny even on v7x's 64 MiB VMEM).
    if tv is None:
        tv = 128
        for cand in (8192, 4096, 2048, 1024, 512, 256, 128):
            if v_pad % cand == 0 and cand * D * 2 <= (4 << 20):
                tv = cand
                break
    assert v_pad % tv == 0
    n_tiles = v_pad // tv

    # Weight prep: NO transpose; bf16 stream halves HBM traffic.
    # (In a real model this cast would be cached outside the hot path.)
    w_p = jnp.asarray(w, jnp.float32)
    b_p = jnp.asarray(b, jnp.float32)
    if v_pad != V:
        w_p = jnp.pad(w_p, ((0, v_pad - V), (0, 0)))
        b_p = jnp.pad(b_p, ((0, v_pad - V),))
    w_bf = w_p.astype(jnp.bfloat16)                 # (v_pad, D)
    b2 = b_p.reshape(1, v_pad)

    cost = pl.CostEstimate(
        flops=2 * B * D * v_pad,
        transcendentals=0,
        bytes_accessed=v_pad * D * 2 + B * v_pad * 4 + v_pad * 4 + B * D * 4)

    out = pl.pallas_call(
        _linear_kernel,
        out_shape=jax.ShapeDtypeStruct((B, v_pad), jnp.float32),
        grid_spec=pltpu.PrefetchScalarGridSpec(
            num_scalar_prefetch=0,
            grid=(n_tiles,),
            in_specs=[
                pl.BlockSpec((B, D), lambda j: (0, 0)),     # mean (resident)
                pl.BlockSpec((tv, D), lambda j: (j, 0)),    # weight row-tile
                pl.BlockSpec((1, tv), lambda j: (0, j)),    # bias tile
            ],
            out_specs=pl.BlockSpec((B, tv), lambda j: (0, j))),
        compiler_params=pltpu.CompilerParams(
            # No cross-tile scratch -> the V axis is safely parallel
            # (v7x splits the weight stream across both TensorCores).
            dimension_semantics=("parallel",),
            vmem_limit_bytes=32 * 1024 * 1024),
        cost_estimate=cost,
    )(mean, w_bf, b2)

    return out[:, :V] if v_pad != V else out


def cbow_reference(idx, emb, w, b):
    norm = jnp.sqrt(jnp.sum(emb * emb, axis=-1, keepdims=True))
    scale = jnp.where(norm > 1.0, 1.0 / (norm + 1e-7), 1.0)
    emb_n = emb * scale
    gathered = jnp.take(emb_n, idx, axis=0)      # (B, C, D)
    mean = gathered.mean(axis=1)                 # (B, D)
    return jnp.dot(mean, w.T, precision=lax.Precision.HIGHEST) + b


if __name__ == "__main__":
    vocab_size = 2000      # not a multiple of 128 -> exercises the pad path
    embed_dim = 128
    batch = 8
    context = 4

    key = jax.random.PRNGKey(0)
    k_idx, k_emb, k_w, k_b = jax.random.split(key, 4)

    idx = jax.random.randint(k_idx, (batch, context), 0, vocab_size,
                             dtype=jnp.int32)
    # embedding ~ N(0,1): many rows exceed norm 1 so the max_norm path runs;
    # linear weight/bias ~ U(-1/sqrt(D), 1/sqrt(D)) like torch's default init.
    emb = jax.random.normal(k_emb, (vocab_size, embed_dim), dtype=jnp.float32)
    bound = 1.0 / (embed_dim ** 0.5)
    w = jax.random.uniform(k_w, (vocab_size, embed_dim), jnp.float32,
                           -bound, bound)
    b = jax.random.uniform(k_b, (vocab_size,), jnp.float32, -bound, bound)

    ref = cbow_reference(idx, emb, w, b)

    # Default tile selection (single big tile at this vocab size).
    out = jax.block_until_ready(cbow_forward(idx, emb, w, b))
    assert out.shape == (batch, vocab_size)
    # bf16 weight/activation stream with f32 accumulation -> ~1e-3 error.
    assert jnp.allclose(out, ref, atol=5e-3, rtol=5e-3)

    # Multi-tile grid path (tv=512 -> 4 parallel V tiles).
    out2 = jax.block_until_ready(cbow_forward(idx, emb, w, b, tv=512))
    assert jnp.allclose(out2, ref, atol=5e-3, rtol=5e-3)

    print("KERNEL_OK")
</pallas_src>

<mosaic_0001>
module attributes {stable_mosaic.version = 11 : i64} {
  func.func @_gather_mean_kernel(%arg0: i32, %arg1: memref<8x4xi32, #tpu.memory_space<smem>>, %arg2: memref<2000x128xf32, #tpu.memory_space<any>>, %arg3: memref<8x128xf32, #tpu.memory_space<vmem>>, %arg4: memref<32x128xf32, #tpu.memory_space<vmem>>, %arg5: memref<32x!tpu.dma_semaphore, #tpu.memory_space<semaphore_mem>>) attributes {dimension_semantics = [#tpu.dimension_semantics<arbitrary>], iteration_bounds = array<i64: 1>, scalar_prefetch = 1 : i64, scratch_operands = 2 : i64, tpu.core_type = #tpu.core_type<tc>, window_params = [{}, {pipeline_mode = #tpu.pipeline_mode<synchronous>, transform_indices = @transform_1, window_bounds = array<i64: 8, 128>}]} {
    %c0 = arith.constant 0 : index
    %c0_0 = arith.constant 0 : index
    %0 = memref.load %arg1[%c0, %c0_0] : memref<8x4xi32, #tpu.memory_space<smem>>
    %c1 = arith.constant 1 : index
    %c0_1 = arith.constant 0 : index
    %1 = memref.load %arg1[%c1, %c0_1] : memref<8x4xi32, #tpu.memory_space<smem>>
    %c2 = arith.constant 2 : index
    %c0_2 = arith.constant 0 : index
    %2 = memref.load %arg1[%c2, %c0_2] : memref<8x4xi32, #tpu.memory_space<smem>>
    %c3 = arith.constant 3 : index
    %c0_3 = arith.constant 0 : index
    %3 = memref.load %arg1[%c3, %c0_3] : memref<8x4xi32, #tpu.memory_space<smem>>
    %c4 = arith.constant 4 : index
    %c0_4 = arith.constant 0 : index
    %4 = memref.load %arg1[%c4, %c0_4] : memref<8x4xi32, #tpu.memory_space<smem>>
    %c5 = arith.constant 5 : index
    %c0_5 = arith.constant 0 : index
    %5 = memref.load %arg1[%c5, %c0_5] : memref<8x4xi32, #tpu.memory_space<smem>>
    %c6 = arith.constant 6 : index
    %c0_6 = arith.constant 0 : index
    %6 = memref.load %arg1[%c6, %c0_6] : memref<8x4xi32, #tpu.memory_space<smem>>
    %c7 = arith.constant 7 : index
    %c0_7 = arith.constant 0 : index
    %7 = memref.load %arg1[%c7, %c0_7] : memref<8x4xi32, #tpu.memory_space<smem>>
    %c0_8 = arith.constant 0 : index
    %c1_9 = arith.constant 1 : index
    %8 = memref.load %arg1[%c0_8, %c1_9] : memref<8x4xi32, #tpu.memory_space<smem>>
    %c1_10 = arith.constant 1 : index
    %c1_11 = arith.constant 1 : index
    %9 = memref.load %arg1[%c1_10, %c1_11] : memref<8x4xi32, #tpu.memory_space<smem>>
    %c2_12 = arith.constant 2 : index
    %c1_13 = arith.constant 1 : index
    %10 = memref.load %arg1[%c2_12, %c1_13] : memref<8x4xi32, #tpu.memory_space<smem>>
    %c3_14 = arith.constant 3 : index
    %c1_15 = arith.constant 1 : index
    %11 = memref.load %arg1[%c3_14, %c1_15] : memref<8x4xi32, #tpu.memory_space<smem>>
    %c4_16 = arith.constant 4 : index
    %c1_17 = arith.constant 1 : index
    %12 = memref.load %arg1[%c4_16, %c1_17] : memref<8x4xi32, #tpu.memory_space<smem>>
    %c5_18 = arith.constant 5 : index
    %c1_19 = arith.constant 1 : index
    %13 = memref.load %arg1[%c5_18, %c1_19] : memref<8x4xi32, #tpu.memory_space<smem>>
    %c6_20 = arith.constant 6 : index
    %c1_21 = arith.constant 1 : index
    %14 = memref.load %arg1[%c6_20, %c1_21] : memref<8x4xi32, #tpu.memory_space<smem>>
    %c7_22 = arith.constant 7 : index
    %c1_23 = arith.constant 1 : index
    %15 = memref.load %arg1[%c7_22, %c1_23] : memref<8x4xi32, #tpu.memory_space<smem>>
    %c0_24 = arith.constant 0 : index
    %c2_25 = arith.constant 2 : index
    %16 = memref.load %arg1[%c0_24, %c2_25] : memref<8x4xi32, #tpu.memory_space<smem>>
    %c1_26 = arith.constant 1 : index
    %c2_27 = arith.constant 2 : index
    %17 = memref.load %arg1[%c1_26, %c2_27] : memref<8x4xi32, #tpu.memory_space<smem>>
    %c2_28 = arith.constant 2 : index
    %c2_29 = arith.constant 2 : index
    %18 = memref.load %arg1[%c2_28, %c2_29] : memref<8x4xi32, #tpu.memory_space<smem>>
    %c3_30 = arith.constant 3 : index
    %c2_31 = arith.constant 2 : index
    %19 = memref.load %arg1[%c3_30, %c2_31] : memref<8x4xi32, #tpu.memory_space<smem>>
    %c4_32 = arith.constant 4 : index
    %c2_33 = arith.constant 2 : index
    %20 = memref.load %arg1[%c4_32, %c2_33] : memref<8x4xi32, #tpu.memory_space<smem>>
    %c5_34 = arith.constant 5 : index
    %c2_35 = arith.constant 2 : index
    %21 = memref.load %arg1[%c5_34, %c2_35] : memref<8x4xi32, #tpu.memory_space<smem>>
    %c6_36 = arith.constant 6 : index
    %c2_37 = arith.constant 2 : index
    %22 = memref.load %arg1[%c6_36, %c2_37] : memref<8x4xi32, #tpu.memory_space<smem>>
    %c7_38 = arith.constant 7 : index
    %c2_39 = arith.constant 2 : index
    %23 = memref.load %arg1[%c7_38, %c2_39] : memref<8x4xi32, #tpu.memory_space<smem>>
    %c0_40 = arith.constant 0 : index
    %c3_41 = arith.constant 3 : index
    %24 = memref.load %arg1[%c0_40, %c3_41] : memref<8x4xi32, #tpu.memory_space<smem>>
    %c1_42 = arith.constant 1 : index
    %c3_43 = arith.constant 3 : index
    %25 = memref.load %arg1[%c1_42, %c3_43] : memref<8x4xi32, #tpu.memory_space<smem>>
    %c2_44 = arith.constant 2 : index
    %c3_45 = arith.constant 3 : index
    %26 = memref.load %arg1[%c2_44, %c3_45] : memref<8x4xi32, #tpu.memory_space<smem>>
    %c3_46 = arith.constant 3 : index
    %c3_47 = arith.constant 3 : index
    %27 = memref.load %arg1[%c3_46, %c3_47] : memref<8x4xi32, #tpu.memory_space<smem>>
    %c4_48 = arith.constant 4 : index
    %c3_49 = arith.constant 3 : index
    %28 = memref.load %arg1[%c4_48, %c3_49] : memref<8x4xi32, #tpu.memory_space<smem>>
    %c5_50 = arith.constant 5 : index
    %c3_51 = arith.constant 3 : index
    %29 = memref.load %arg1[%c5_50, %c3_51] : memref<8x4xi32, #tpu.memory_space<smem>>
    %c6_52 = arith.constant 6 : index
    %c3_53 = arith.constant 3 : index
    %30 = memref.load %arg1[%c6_52, %c3_53] : memref<8x4xi32, #tpu.memory_space<smem>>
    %c7_54 = arith.constant 7 : index
    %c3_55 = arith.constant 3 : index
    %31 = memref.load %arg1[%c7_54, %c3_55] : memref<8x4xi32, #tpu.memory_space<smem>>
    %c0_i32 = arith.constant 0 : i32
    %c0_i32_56 = arith.constant 0 : i32
    %32 = tpu.memref_slice %arg2[%0, %c0_i32_56] : memref<2000x128xf32, #tpu.memory_space<any>> -> memref<1x128xf32, #tpu.memory_space<any>>
    %c0_i32_57 = arith.constant 0 : i32
    %c0_i32_58 = arith.constant 0 : i32
    %33 = tpu.memref_slice %arg4[%c0_i32_57, %c0_i32_58] : memref<32x128xf32, #tpu.memory_space<vmem>> -> memref<1x128xf32, #tpu.memory_space<vmem>>
    %34 = tpu.memref_slice %arg5[%c0_i32] : memref<32x!tpu.dma_semaphore, #tpu.memory_space<semaphore_mem>> -> memref<1x!tpu.dma_semaphore, #tpu.memory_space<semaphore_mem>>
    %35 = tpu.memref_squeeze %34 : memref<1x!tpu.dma_semaphore, #tpu.memory_space<semaphore_mem>> -> memref<!tpu.dma_semaphore, #tpu.memory_space<semaphore_mem>>
    tpu.enqueue_dma source(%32 : memref<1x128xf32, #tpu.memory_space<any>>) target(%33 : memref<1x128xf32, #tpu.memory_space<vmem>>) target_semaphore(%35 : memref<!tpu.dma_semaphore, #tpu.memory_space<semaphore_mem>>)
    %c1_i32 = arith.constant 1 : i32
    %c0_i32_59 = arith.constant 0 : i32
    %36 = tpu.memref_slice %arg2[%1, %c0_i32_59] : memref<2000x128xf32, #tpu.memory_space<any>> -> memref<1x128xf32, #tpu.memory_space<any>>
    %c1_i32_60 = arith.constant 1 : i32
    %c0_i32_61 = arith.constant 0 : i32
    %37 = tpu.memref_slice %arg4[%c1_i32_60, %c0_i32_61] : memref<32x128xf32, #tpu.memory_space<vmem>> -> memref<1x128xf32, #tpu.memory_space<vmem>>
    %38 = tpu.memref_slice %arg5[%c1_i32] : memref<32x!tpu.dma_semaphore, #tpu.memory_space<semaphore_mem>> -> memref<1x!tpu.dma_semaphore, #tpu.memory_space<semaphore_mem>>
    %39 = tpu.memref_squeeze %38 : memref<1x!tpu.dma_semaphore, #tpu.memory_space<semaphore_mem>> -> memref<!tpu.dma_semaphore, #tpu.memory_space<semaphore_mem>>
    tpu.enqueue_dma source(%36 : memref<1x128xf32, #tpu.memory_space<any>>) target(%37 : memref<1x128xf32, #tpu.memory_space<vmem>>) target_semaphore(%39 : memref<!tpu.dma_semaphore, #tpu.memory_space<semaphore_mem>>)
    %c2_i32 = arith.constant 2 : i32
    %c0_i32_62 = arith.constant 0 : i32
    %40 = tpu.memref_slice %arg2[%2, %c0_i32_62] : memref<2000x128xf32, #tpu.memory_space<any>> -> memref<1x128xf32, #tpu.memory_space<any>>
    %c2_i32_63 = arith.constant 2 : i32
    %c0_i32_64 = arith.constant 0 : i32
    %41 = tpu.memref_slice %arg4[%c2_i32_63, %c0_i32_64] : memref<32x128xf32, #tpu.memory_space<vmem>> -> memref<1x128xf32, #tpu.memory_space<vmem>>
    %42 = tpu.memref_slice %arg5[%c2_i32] : memref<32x!tpu.dma_semaphore, #tpu.memory_space<semaphore_mem>> -> memref<1x!tpu.dma_semaphore, #tpu.memory_space<semaphore_mem>>
    %43 = tpu.memref_squeeze %42 : memref<1x!tpu.dma_semaphore, #tpu.memory_space<semaphore_mem>> -> memref<!tpu.dma_semaphore, #tpu.memory_space<semaphore_mem>>
    tpu.enqueue_dma source(%40 : memref<1x128xf32, #tpu.memory_space<any>>) target(%41 : memref<1x128xf32, #tpu.memory_space<vmem>>) target_semaphore(%43 : memref<!tpu.dma_semaphore, #tpu.memory_space<semaphore_mem>>)
    %c3_i32 = arith.constant 3 : i32
    %c0_i32_65 = arith.constant 0 : i32
    %44 = tpu.memref_slice %arg2[%3, %c0_i32_65] : memref<2000x128xf32, #tpu.memory_space<any>> -> memref<1x128xf32, #tpu.memory_space<any>>
    %c3_i32_66 = arith.constant 3 : i32
    %c0_i32_67 = arith.constant 0 : i32
    %45 = tpu.memref_slice %arg4[%c3_i32_66, %c0_i32_67] : memref<32x128xf32, #tpu.memory_space<vmem>> -> memref<1x128xf32, #tpu.memory_space<vmem>>
    %46 = tpu.memref_slice %arg5[%c3_i32] : memref<32x!tpu.dma_semaphore, #tpu.memory_space<semaphore_mem>> -> memref<1x!tpu.dma_semaphore, #tpu.memory_space<semaphore_mem>>
    %47 = tpu.memref_squeeze %46 : memref<1x!tpu.dma_semaphore, #tpu.memory_space<semaphore_mem>> -> memref<!tpu.dma_semaphore, #tpu.memory_space<semaphore_mem>>
    tpu.enqueue_dma source(%44 : memref<1x128xf32, #tpu.memory_space<any>>) target(%45 : memref<1x128xf32, #tpu.memory_space<vmem>>) target_semaphore(%47 : memref<!tpu.dma_semaphore, #tpu.memory_space<semaphore_mem>>)
    %c4_i32 = arith.constant 4 : i32
    %c0_i32_68 = arith.constant 0 : i32
    %48 = tpu.memref_slice %arg2[%4, %c0_i32_68] : memref<2000x128xf32, #tpu.memory_space<any>> -> memref<1x128xf32, #tpu.memory_space<any>>
    %c4_i32_69 = arith.constant 4 : i32
    %c0_i32_70 = arith.constant 0 : i32
    %49 = tpu.memref_slice %arg4[%c4_i32_69, %c0_i32_70] : memref<32x128xf32, #tpu.memory_space<vmem>> -> memref<1x128xf32, #tpu.memory_space<vmem>>
    %50 = tpu.memref_slice %arg5[%c4_i32] : memref<32x!tpu.dma_semaphore, #tpu.memory_space<semaphore_mem>> -> memref<1x!tpu.dma_semaphore, #tpu.memory_space<semaphore_mem>>
    %51 = tpu.memref_squeeze %50 : memref<1x!tpu.dma_semaphore, #tpu.memory_space<semaphore_mem>> -> memref<!tpu.dma_semaphore, #tpu.memory_space<semaphore_mem>>
    tpu.enqueue_dma source(%48 : memref<1x128xf32, #tpu.memory_space<any>>) target(%49 : memref<1x128xf32, #tpu.memory_space<vmem>>) target_semaphore(%51 : memref<!tpu.dma_semaphore, #tpu.memory_space<semaphore_mem>>)
    %c5_i32 = arith.constant 5 : i32
    %c0_i32_71 = arith.constant 0 : i32
    %52 = tpu.memref_slice %arg2[%5, %c0_i32_71] : memref<2000x128xf32, #tpu.memory_space<any>> -> memref<1x128xf32, #tpu.memory_space<any>>
    %c5_i32_72 = arith.constant 5 : i32
    %c0_i32_73 = arith.constant 0 : i32
    %53 = tpu.memref_slice %arg4[%c5_i32_72, %c0_i32_73] : memref<32x128xf32, #tpu.memory_space<vmem>> -> memref<1x128xf32, #tpu.memory_space<vmem>>
    %54 = tpu.memref_slice %arg5[%c5_i32] : memref<32x!tpu.dma_semaphore, #tpu.memory_space<semaphore_mem>> -> memref<1x!tpu.dma_semaphore, #tpu.memory_space<semaphore_mem>>
    %55 = tpu.memref_squeeze %54 : memref<1x!tpu.dma_semaphore, #tpu.memory_space<semaphore_mem>> -> memref<!tpu.dma_semaphore, #tpu.memory_space<semaphore_mem>>
    tpu.enqueue_dma source(%52 : memref<1x128xf32, #tpu.memory_space<any>>) target(%53 : memref<1x128xf32, #tpu.memory_space<vmem>>) target_semaphore(%55 : memref<!tpu.dma_semaphore, #tpu.memory_space<semaphore_mem>>)
    %c6_i32 = arith.constant 6 : i32
    %c0_i32_74 = arith.constant 0 : i32
    %56 = tpu.memref_slice %arg2[%6, %c0_i32_74] : memref<2000x128xf32, #tpu.memory_space<any>> -> memref<1x128xf32, #tpu.memory_space<any>>
    %c6_i32_75 = arith.constant 6 : i32
    %c0_i32_76 = arith.constant 0 : i32
    %57 = tpu.memref_slice %arg4[%c6_i32_75, %c0_i32_76] : memref<32x128xf32, #tpu.memory_space<vmem>> -> memref<1x128xf32, #tpu.memory_space<vmem>>
    %58 = tpu.memref_slice %arg5[%c6_i32] : memref<32x!tpu.dma_semaphore, #tpu.memory_space<semaphore_mem>> -> memref<1x!tpu.dma_semaphore, #tpu.memory_space<semaphore_mem>>
    %59 = tpu.memref_squeeze %58 : memref<1x!tpu.dma_semaphore, #tpu.memory_space<semaphore_mem>> -> memref<!tpu.dma_semaphore, #tpu.memory_space<semaphore_mem>>
    tpu.enqueue_dma source(%56 : memref<1x128xf32, #tpu.memory_space<any>>) target(%57 : memref<1x128xf32, #tpu.memory_space<vmem>>) target_semaphore(%59 : memref<!tpu.dma_semaphore, #tpu.memory_space<semaphore_mem>>)
    %c7_i32 = arith.constant 7 : i32
    %c0_i32_77 = arith.constant 0 : i32
    %60 = tpu.memref_slice %arg2[%7, %c0_i32_77] : memref<2000x128xf32, #tpu.memory_space<any>> -> memref<1x128xf32, #tpu.memory_space<any>>
    %c7_i32_78 = arith.constant 7 : i32
    %c0_i32_79 = arith.constant 0 : i32
    %61 = tpu.memref_slice %arg4[%c7_i32_78, %c0_i32_79] : memref<32x128xf32, #tpu.memory_space<vmem>> -> memref<1x128xf32, #tpu.memory_space<vmem>>
    %62 = tpu.memref_slice %arg5[%c7_i32] : memref<32x!tpu.dma_semaphore, #tpu.memory_space<semaphore_mem>> -> memref<1x!tpu.dma_semaphore, #tpu.memory_space<semaphore_mem>>
    %63 = tpu.memref_squeeze %62 : memref<1x!tpu.dma_semaphore, #tpu.memory_space<semaphore_mem>> -> memref<!tpu.dma_semaphore, #tpu.memory_space<semaphore_mem>>
    tpu.enqueue_dma source(%60 : memref<1x128xf32, #tpu.memory_space<any>>) target(%61 : memref<1x128xf32, #tpu.memory_space<vmem>>) target_semaphore(%63 : memref<!tpu.dma_semaphore, #tpu.memory_space<semaphore_mem>>)
    %c8_i32 = arith.constant 8 : i32
    %c0_i32_80 = arith.constant 0 : i32
    %64 = tpu.memref_slice %arg2[%8, %c0_i32_80] : memref<2000x128xf32, #tpu.memory_space<any>> -> memref<1x128xf32, #tpu.memory_space<any>>
    %c8_i32_81 = arith.constant 8 : i32
    %c0_i32_82 = arith.constant 0 : i32
    %65 = tpu.memref_slice %arg4[%c8_i32_81, %c0_i32_82] : memref<32x128xf32, #tpu.memory_space<vmem>> -> memref<1x128xf32, #tpu.memory_space<vmem>>
    %66 = tpu.memref_slice %arg5[%c8_i32] : memref<32x!tpu.dma_semaphore, #tpu.memory_space<semaphore_mem>> -> memref<1x!tpu.dma_semaphore, #tpu.memory_space<semaphore_mem>>
    %67 = tpu.memref_squeeze %66 : memref<1x!tpu.dma_semaphore, #tpu.memory_space<semaphore_mem>> -> memref<!tpu.dma_semaphore, #tpu.memory_space<semaphore_mem>>
    tpu.enqueue_dma source(%64 : memref<1x128xf32, #tpu.memory_space<any>>) target(%65 : memref<1x128xf32, #tpu.memory_space<vmem>>) target_semaphore(%67 : memref<!tpu.dma_semaphore, #tpu.memory_space<semaphore_mem>>)
    %c9_i32 = arith.constant 9 : i32
    %c0_i32_83 = arith.constant 0 : i32
    %68 = tpu.memref_slice %arg2[%9, %c0_i32_83] : memref<2000x128xf32, #tpu.memory_space<any>> -> memref<1x128xf32, #tpu.memory_space<any>>
    %c9_i32_84 = arith.constant 9 : i32
    %c0_i32_85 = arith.constant 0 : i32
    %69 = tpu.memref_slice %arg4[%c9_i32_84, %c0_i32_85] : memref<32x128xf32, #tpu.memory_space<vmem>> -> memref<1x128xf32, #tpu.memory_space<vmem>>
    %70 = tpu.memref_slice %arg5[%c9_i32] : memref<32x!tpu.dma_semaphore, #tpu.memory_space<semaphore_mem>> -> memref<1x!tpu.dma_semaphore, #tpu.memory_space<semaphore_mem>>
    %71 = tpu.memref_squeeze %70 : memref<1x!tpu.dma_semaphore, #tpu.memory_space<semaphore_mem>> -> memref<!tpu.dma_semaphore, #tpu.memory_space<semaphore_mem>>
    tpu.enqueue_dma source(%68 : memref<1x128xf32, #tpu.memory_space<any>>) target(%69 : memref<1x128xf32, #tpu.memory_space<vmem>>) target_semaphore(%71 : memref<!tpu.dma_semaphore, #tpu.memory_space<semaphore_mem>>)
    %c10_i32 = arith.constant 10 : i32
    %c0_i32_86 = arith.constant 0 : i32
    %72 = tpu.memref_slice %arg2[%10, %c0_i32_86] : memref<2000x128xf32, #tpu.memory_space<any>> -> memref<1x128xf32, #tpu.memory_space<any>>
    %c10_i32_87 = arith.constant 10 : i32
    %c0_i32_88 = arith.constant 0 : i32
    %73 = tpu.memref_slice %arg4[%c10_i32_87, %c0_i32_88] : memref<32x128xf32, #tpu.memory_space<vmem>> -> memref<1x128xf32, #tpu.memory_space<vmem>>
    %74 = tpu.memref_slice %arg5[%c10_i32] : memref<32x!tpu.dma_semaphore, #tpu.memory_space<semaphore_mem>> -> memref<1x!tpu.dma_semaphore, #tpu.memory_space<semaphore_mem>>
    %75 = tpu.memref_squeeze %74 : memref<1x!tpu.dma_semaphore, #tpu.memory_space<semaphore_mem>> -> memref<!tpu.dma_semaphore, #tpu.memory_space<semaphore_mem>>
    tpu.enqueue_dma source(%72 : memref<1x128xf32, #tpu.memory_space<any>>) target(%73 : memref<1x128xf32, #tpu.memory_space<vmem>>) target_semaphore(%75 : memref<!tpu.dma_semaphore, #tpu.memory_space<semaphore_mem>>)
    %c11_i32 = arith.constant 11 : i32
    %c0_i32_89 = arith.constant 0 : i32
    %76 = tpu.memref_slice %arg2[%11, %c0_i32_89] : memref<2000x128xf32, #tpu.memory_space<any>> -> memref<1x128xf32, #tpu.memory_space<any>>
    %c11_i32_90 = arith.constant 11 : i32
    %c0_i32_91 = arith.constant 0 : i32
    %77 = tpu.memref_slice %arg4[%c11_i32_90, %c0_i32_91] : memref<32x128xf32, #tpu.memory_space<vmem>> -> memref<1x128xf32, #tpu.memory_space<vmem>>
    %78 = tpu.memref_slice %arg5[%c11_i32] : memref<32x!tpu.dma_semaphore, #tpu.memory_space<semaphore_mem>> -> memref<1x!tpu.dma_semaphore, #tpu.memory_space<semaphore_mem>>
    %79 = tpu.memref_squeeze %78 : memref<1x!tpu.dma_semaphore, #tpu.memory_space<semaphore_mem>> -> memref<!tpu.dma_semaphore, #tpu.memory_space<semaphore_mem>>
    tpu.enqueue_dma source(%76 : memref<1x128xf32, #tpu.memory_space<any>>) target(%77 : memref<1x128xf32, #tpu.memory_space<vmem>>) target_semaphore(%79 : memref<!tpu.dma_semaphore, #tpu.memory_space<semaphore_mem>>)
    %c12_i32 = arith.constant 12 : i32
    %c0_i32_92 = arith.constant 0 : i32
    %80 = tpu.memref_slice %arg2[%12, %c0_i32_92] : memref<2000x128xf32, #tpu.memory_space<any>> -> memref<1x128xf32, #tpu.memory_space<any>>
    %c12_i32_93 = arith.constant 12 : i32
    %c0_i32_94 = arith.constant 0 : i32
    %81 = tpu.memref_slice %arg4[%c12_i32_93, %c0_i32_94] : memref<32x128xf32, #tpu.memory_space<vmem>> -> memref<1x128xf32, #tpu.memory_space<vmem>>
    %82 = tpu.memref_slice %arg5[%c12_i32] : memref<32x!tpu.dma_semaphore, #tpu.memory_space<semaphore_mem>> -> memref<1x!tpu.dma_semaphore, #tpu.memory_space<semaphore_mem>>
    %83 = tpu.memref_squeeze %82 : memref<1x!tpu.dma_semaphore, #tpu.memory_space<semaphore_mem>> -> memref<!tpu.dma_semaphore, #tpu.memory_space<semaphore_mem>>
    tpu.enqueue_dma source(%80 : memref<1x128xf32, #tpu.memory_space<any>>) target(%81 : memref<1x128xf32, #tpu.memory_space<vmem>>) target_semaphore(%83 : memref<!tpu.dma_semaphore, #tpu.memory_space<semaphore_mem>>)
    %c13_i32 = arith.constant 13 : i32
    %c0_i32_95 = arith.constant 0 : i32
    %84 = tpu.memref_slice %arg2[%13, %c0_i32_95] : memref<2000x128xf32, #tpu.memory_space<any>> -> memref<1x128xf32, #tpu.memory_space<any>>
    %c13_i32_96 = arith.constant 13 : i32
    %c0_i32_97 = arith.constant 0 : i32
    %85 = tpu.memref_slice %arg4[%c13_i32_96, %c0_i32_97] : memref<32x128xf32, #tpu.memory_space<vmem>> -> memref<1x128xf32, #tpu.memory_space<vmem>>
    %86 = tpu.memref_slice %arg5[%c13_i32] : memref<32x!tpu.dma_semaphore, #tpu.memory_space<semaphore_mem>> -> memref<1x!tpu.dma_semaphore, #tpu.memory_space<semaphore_mem>>
    %87 = tpu.memref_squeeze %86 : memref<1x!tpu.dma_semaphore, #tpu.memory_space<semaphore_mem>> -> memref<!tpu.dma_semaphore, #tpu.memory_space<semaphore_mem>>
    tpu.enqueue_dma source(%84 : memref<1x128xf32, #tpu.memory_space<any>>) target(%85 : memref<1x128xf32, #tpu.memory_space<vmem>>) target_semaphore(%87 : memref<!tpu.dma_semaphore, #tpu.memory_space<semaphore_mem>>)
    %c14_i32 = arith.constant 14 : i32
    %c0_i32_98 = arith.constant 0 : i32
    %88 = tpu.memref_slice %arg2[%14, %c0_i32_98] : memref<2000x128xf32, #tpu.memory_space<any>> -> memref<1x128xf32, #tpu.memory_space<any>>
    %c14_i32_99 = arith.constant 14 : i32
    %c0_i32_100 = arith.constant 0 : i32
    %89 = tpu.memref_slice %arg4[%c14_i32_99, %c0_i32_100] : memref<32x128xf32, #tpu.memory_space<vmem>> -> memref<1x128xf32, #tpu.memory_space<vmem>>
    %90 = tpu.memref_slice %arg5[%c14_i32] : memref<32x!tpu.dma_semaphore, #tpu.memory_space<semaphore_mem>> -> memref<1x!tpu.dma_semaphore, #tpu.memory_space<semaphore_mem>>
    %91 = tpu.memref_squeeze %90 : memref<1x!tpu.dma_semaphore, #tpu.memory_space<semaphore_mem>> -> memref<!tpu.dma_semaphore, #tpu.memory_space<semaphore_mem>>
    tpu.enqueue_dma source(%88 : memref<1x128xf32, #tpu.memory_space<any>>) target(%89 : memref<1x128xf32, #tpu.memory_space<vmem>>) target_semaphore(%91 : memref<!tpu.dma_semaphore, #tpu.memory_space<semaphore_mem>>)
    %c15_i32 = arith.constant 15 : i32
    %c0_i32_101 = arith.constant 0 : i32
    %92 = tpu.memref_slice %arg2[%15, %c0_i32_101] : memref<2000x128xf32, #tpu.memory_space<any>> -> memref<1x128xf32, #tpu.memory_space<any>>
    %c15_i32_102 = arith.constant 15 : i32
    %c0_i32_103 = arith.constant 0 : i32
    %93 = tpu.memref_slice %arg4[%c15_i32_102, %c0_i32_103] : memref<32x128xf32, #tpu.memory_space<vmem>> -> memref<1x128xf32, #tpu.memory_space<vmem>>
    %94 = tpu.memref_slice %arg5[%c15_i32] : memref<32x!tpu.dma_semaphore, #tpu.memory_space<semaphore_mem>> -> memref<1x!tpu.dma_semaphore, #tpu.memory_space<semaphore_mem>>
    %95 = tpu.memref_squeeze %94 : memref<1x!tpu.dma_semaphore, #tpu.memory_space<semaphore_mem>> -> memref<!tpu.dma_semaphore, #tpu.memory_space<semaphore_mem>>
    tpu.enqueue_dma source(%92 : memref<1x128xf32, #tpu.memory_space<any>>) target(%93 : memref<1x128xf32, #tpu.memory_space<vmem>>) target_semaphore(%95 : memref<!tpu.dma_semaphore, #tpu.memory_space<semaphore_mem>>)
    %c16_i32 = arith.constant 16 : i32
    %c0_i32_104 = arith.constant 0 : i32
    %96 = tpu.memref_slice %arg2[%16, %c0_i32_104] : memref<2000x128xf32, #tpu.memory_space<any>> -> memref<1x128xf32, #tpu.memory_space<any>>
    %c16_i32_105 = arith.constant 16 : i32
    %c0_i32_106 = arith.constant 0 : i32
    %97 = tpu.memref_slice %arg4[%c16_i32_105, %c0_i32_106] : memref<32x128xf32, #tpu.memory_space<vmem>> -> memref<1x128xf32, #tpu.memory_space<vmem>>
    %98 = tpu.memref_slice %arg5[%c16_i32] : memref<32x!tpu.dma_semaphore, #tpu.memory_space<semaphore_mem>> -> memref<1x!tpu.dma_semaphore, #tpu.memory_space<semaphore_mem>>
    %99 = tpu.memref_squeeze %98 : memref<1x!tpu.dma_semaphore, #tpu.memory_space<semaphore_mem>> -> memref<!tpu.dma_semaphore, #tpu.memory_space<semaphore_mem>>
    tpu.enqueue_dma source(%96 : memref<1x128xf32, #tpu.memory_space<any>>) target(%97 : memref<1x128xf32, #tpu.memory_space<vmem>>) target_semaphore(%99 : memref<!tpu.dma_semaphore, #tpu.memory_space<semaphore_mem>>)
    %c17_i32 = arith.constant 17 : i32
    %c0_i32_107 = arith.constant 0 : i32
    %100 = tpu.memref_slice %arg2[%17, %c0_i32_107] : memref<2000x128xf32, #tpu.memory_space<any>> -> memref<1x128xf32, #tpu.memory_space<any>>
    %c17_i32_108 = arith.constant 17 : i32
    %c0_i32_109 = arith.constant 0 : i32
    %101 = tpu.memref_slice %arg4[%c17_i32_108, %c0_i32_109] : memref<32x128xf32, #tpu.memory_space<vmem>> -> memref<1x128xf32, #tpu.memory_space<vmem>>
    %102 = tpu.memref_slice %arg5[%c17_i32] : memref<32x!tpu.dma_semaphore, #tpu.memory_space<semaphore_mem>> -> memref<1x!tpu.dma_semaphore, #tpu.memory_space<semaphore_mem>>
    %103 = tpu.memref_squeeze %102 : memref<1x!tpu.dma_semaphore, #tpu.memory_space<semaphore_mem>> -> memref<!tpu.dma_semaphore, #tpu.memory_space<semaphore_mem>>
    tpu.enqueue_dma source(%100 : memref<1x128xf32, #tpu.memory_space<any>>) target(%101 : memref<1x128xf32, #tpu.memory_space<vmem>>) target_semaphore(%103 : memref<!tpu.dma_semaphore, #tpu.memory_space<semaphore_mem>>)
    %c18_i32 = arith.constant 18 : i32
    %c0_i32_110 = arith.constant 0 : i32
    %104 = tpu.memref_slice %arg2[%18, %c0_i32_110] : memref<2000x128xf32, #tpu.memory_space<any>> -> memref<1x128xf32, #tpu.memory_space<any>>
    %c18_i32_111 = arith.constant 18 : i32
    %c0_i32_112 = arith.constant 0 : i32
    %105 = tpu.memref_slice %arg4[%c18_i32_111, %c0_i32_112] : memref<32x128xf32, #tpu.memory_space<vmem>> -> memref<1x128xf32, #tpu.memory_space<vmem>>
    %106 = tpu.memref_slice %arg5[%c18_i32] : memref<32x!tpu.dma_semaphore, #tpu.memory_space<semaphore_mem>> -> memref<1x!tpu.dma_semaphore, #tpu.memory_space<semaphore_mem>>
    %107 = tpu.memref_squeeze %106 : memref<1x!tpu.dma_semaphore, #tpu.memory_space<semaphore_mem>> -> memref<!tpu.dma_semaphore, #tpu.memory_space<semaphore_mem>>
    tpu.enqueue_dma source(%104 : memref<1x128xf32, #tpu.memory_space<any>>) target(%105 : memref<1x128xf32, #tpu.memory_space<vmem>>) target_semaphore(%107 : memref<!tpu.dma_semaphore, #tpu.memory_space<semaphore_mem>>)
    %c19_i32 = arith.constant 19 : i32
    %c0_i32_113 = arith.constant 0 : i32
    %108 = tpu.memref_slice %arg2[%19, %c0_i32_113] : memref<2000x128xf32, #tpu.memory_space<any>> -> memref<1x128xf32, #tpu.memory_space<any>>
    %c19_i32_114 = arith.constant 19 : i32
    %c0_i32_115 = arith.constant 0 : i32
    %109 = tpu.memref_slice %arg4[%c19_i32_114, %c0_i32_115] : memref<32x128xf32, #tpu.memory_space<vmem>> -> memref<1x128xf32, #tpu.memory_space<vmem>>
    %110 = tpu.memref_slice %arg5[%c19_i32] : memref<32x!tpu.dma_semaphore, #tpu.memory_space<semaphore_mem>> -> memref<1x!tpu.dma_semaphore, #tpu.memory_space<semaphore_mem>>
    %111 = tpu.memref_squeeze %110 : memref<1x!tpu.dma_semaphore, #tpu.memory_space<semaphore_mem>> -> memref<!tpu.dma_semaphore, #tpu.memory_space<semaphore_mem>>
    tpu.enqueue_dma source(%108 : memref<1x128xf32, #tpu.memory_space<any>>) target(%109 : memref<1x128xf32, #tpu.memory_space<vmem>>) target_semaphore(%111 : memref<!tpu.dma_semaphore, #tpu.memory_space<semaphore_mem>>)
    %c20_i32 = arith.constant 20 : i32
    %c0_i32_116 = arith.constant 0 : i32
    %112 = tpu.memref_slice %arg2[%20, %c0_i32_116] : memref<2000x128xf32, #tpu.memory_space<any>> -> memref<1x128xf32, #tpu.memory_space<any>>
    %c20_i32_117 = arith.constant 20 : i32
    %c0_i32_118 = arith.constant 0 : i32
    %113 = tpu.memref_slice %arg4[%c20_i32_117, %c0_i32_118] : memref<32x128xf32, #tpu.memory_space<vmem>> -> memref<1x128xf32, #tpu.memory_space<vmem>>
    %114 = tpu.memref_slice %arg5[%c20_i32] : memref<32x!tpu.dma_semaphore, #tpu.memory_space<semaphore_mem>> -> memref<1x!tpu.dma_semaphore, #tpu.memory_space<semaphore_mem>>
    %115 = tpu.memref_squeeze %114 : memref<1x!tpu.dma_semaphore, #tpu.memory_space<semaphore_mem>> -> memref<!tpu.dma_semaphore, #tpu.memory_space<semaphore_mem>>
    tpu.enqueue_dma source(%112 : memref<1x128xf32, #tpu.memory_space<any>>) target(%113 : memref<1x128xf32, #tpu.memory_space<vmem>>) target_semaphore(%115 : memref<!tpu.dma_semaphore, #tpu.memory_space<semaphore_mem>>)
    %c21_i32 = arith.constant 21 : i32
    %c0_i32_119 = arith.constant 0 : i32
    %116 = tpu.memref_slice %arg2[%21, %c0_i32_119] : memref<2000x128xf32, #tpu.memory_space<any>> -> memref<1x128xf32, #tpu.memory_space<any>>
    %c21_i32_120 = arith.constant 21 : i32
    %c0_i32_121 = arith.constant 0 : i32
    %117 = tpu.memref_slice %arg4[%c21_i32_120, %c0_i32_121] : memref<32x128xf32, #tpu.memory_space<vmem>> -> memref<1x128xf32, #tpu.memory_space<vmem>>
    %118 = tpu.memref_slice %arg5[%c21_i32] : memref<32x!tpu.dma_semaphore, #tpu.memory_space<semaphore_mem>> -> memref<1x!tpu.dma_semaphore, #tpu.memory_space<semaphore_mem>>
    %119 = tpu.memref_squeeze %118 : memref<1x!tpu.dma_semaphore, #tpu.memory_space<semaphore_mem>> -> memref<!tpu.dma_semaphore, #tpu.memory_space<semaphore_mem>>
    tpu.enqueue_dma source(%116 : memref<1x128xf32, #tpu.memory_space<any>>) target(%117 : memref<1x128xf32, #tpu.memory_space<vmem>>) target_semaphore(%119 : memref<!tpu.dma_semaphore, #tpu.memory_space<semaphore_mem>>)
    %c22_i32 = arith.constant 22 : i32
    %c0_i32_122 = arith.constant 0 : i32
    %120 = tpu.memref_slice %arg2[%22, %c0_i32_122] : memref<2000x128xf32, #tpu.memory_space<any>> -> memref<1x128xf32, #tpu.memory_space<any>>
    %c22_i32_123 = arith.constant 22 : i32
    %c0_i32_124 = arith.constant 0 : i32
    %121 = tpu.memref_slice %arg4[%c22_i32_123, %c0_i32_124] : memref<32x128xf32, #tpu.memory_space<vmem>> -> memref<1x128xf32, #tpu.memory_space<vmem>>
    %122 = tpu.memref_slice %arg5[%c22_i32] : memref<32x!tpu.dma_semaphore, #tpu.memory_space<semaphore_mem>> -> memref<1x!tpu.dma_semaphore, #tpu.memory_space<semaphore_mem>>
    %123 = tpu.memref_squeeze %122 : memref<1x!tpu.dma_semaphore, #tpu.memory_space<semaphore_mem>> -> memref<!tpu.dma_semaphore, #tpu.memory_space<semaphore_mem>>
    tpu.enqueue_dma source(%120 : memref<1x128xf32, #tpu.memory_space<any>>) target(%121 : memref<1x128xf32, #tpu.memory_space<vmem>>) target_semaphore(%123 : memref<!tpu.dma_semaphore, #tpu.memory_space<semaphore_mem>>)
    %c23_i32 = arith.constant 23 : i32
    %c0_i32_125 = arith.constant 0 : i32
    %124 = tpu.memref_slice %arg2[%23, %c0_i32_125] : memref<2000x128xf32, #tpu.memory_space<any>> -> memref<1x128xf32, #tpu.memory_space<any>>
    %c23_i32_126 = arith.constant 23 : i32
    %c0_i32_127 = arith.constant 0 : i32
    %125 = tpu.memref_slice %arg4[%c23_i32_126, %c0_i32_127] : memref<32x128xf32, #tpu.memory_space<vmem>> -> memref<1x128xf32, #tpu.memory_space<vmem>>
    %126 = tpu.memref_slice %arg5[%c23_i32] : memref<32x!tpu.dma_semaphore, #tpu.memory_space<semaphore_mem>> -> memref<1x!tpu.dma_semaphore, #tpu.memory_space<semaphore_mem>>
    %127 = tpu.memref_squeeze %126 : memref<1x!tpu.dma_semaphore, #tpu.memory_space<semaphore_mem>> -> memref<!tpu.dma_semaphore, #tpu.memory_space<semaphore_mem>>
    tpu.enqueue_dma source(%124 : memref<1x128xf32, #tpu.memory_space<any>>) target(%125 : memref<1x128xf32, #tpu.memory_space<vmem>>) target_semaphore(%127 : memref<!tpu.dma_semaphore, #tpu.memory_space<semaphore_mem>>)
    %c24_i32 = arith.constant 24 : i32
    %c0_i32_128 = arith.constant 0 : i32
    %128 = tpu.memref_slice %arg2[%24, %c0_i32_128] : memref<2000x128xf32, #tpu.memory_space<any>> -> memref<1x128xf32, #tpu.memory_space<any>>
    %c24_i32_129 = arith.constant 24 : i32
    %c0_i32_130 = arith.constant 0 : i32
    %129 = tpu.memref_slice %arg4[%c24_i32_129, %c0_i32_130] : memref<32x128xf32, #tpu.memory_space<vmem>> -> memref<1x128xf32, #tpu.memory_space<vmem>>
    %130 = tpu.memref_slice %arg5[%c24_i32] : memref<32x!tpu.dma_semaphore, #tpu.memory_space<semaphore_mem>> -> memref<1x!tpu.dma_semaphore, #tpu.memory_space<semaphore_mem>>
    %131 = tpu.memref_squeeze %130 : memref<1x!tpu.dma_semaphore, #tpu.memory_space<semaphore_mem>> -> memref<!tpu.dma_semaphore, #tpu.memory_space<semaphore_mem>>
    tpu.enqueue_dma source(%128 : memref<1x128xf32, #tpu.memory_space<any>>) target(%129 : memref<1x128xf32, #tpu.memory_space<vmem>>) target_semaphore(%131 : memref<!tpu.dma_semaphore, #tpu.memory_space<semaphore_mem>>)
    %c25_i32 = arith.constant 25 : i32
    %c0_i32_131 = arith.constant 0 : i32
    %132 = tpu.memref_slice %arg2[%25, %c0_i32_131] : memref<2000x128xf32, #tpu.memory_space<any>> -> memref<1x128xf32, #tpu.memory_space<any>>
    %c25_i32_132 = arith.constant 25 : i32
    %c0_i32_133 = arith.constant 0 : i32
    %133 = tpu.memref_slice %arg4[%c25_i32_132, %c0_i32_133] : memref<32x128xf32, #tpu.memory_space<vmem>> -> memref<1x128xf32, #tpu.memory_space<vmem>>
    %134 = tpu.memref_slice %arg5[%c25_i32] : memref<32x!tpu.dma_semaphore, #tpu.memory_space<semaphore_mem>> -> memref<1x!tpu.dma_semaphore, #tpu.memory_space<semaphore_mem>>
    %135 = tpu.memref_squeeze %134 : memref<1x!tpu.dma_semaphore, #tpu.memory_space<semaphore_mem>> -> memref<!tpu.dma_semaphore, #tpu.memory_space<semaphore_mem>>
    tpu.enqueue_dma source(%132 : memref<1x128xf32, #tpu.memory_space<any>>) target(%133 : memref<1x128xf32, #tpu.memory_space<vmem>>) target_semaphore(%135 : memref<!tpu.dma_semaphore, #tpu.memory_space<semaphore_mem>>)
    %c26_i32 = arith.constant 26 : i32
    %c0_i32_134 = arith.constant 0 : i32
    %136 = tpu.memref_slice %arg2[%26, %c0_i32_134] : memref<2000x128xf32, #tpu.memory_space<any>> -> memref<1x128xf32, #tpu.memory_space<any>>
    %c26_i32_135 = arith.constant 26 : i32
    %c0_i32_136 = arith.constant 0 : i32
    %137 = tpu.memref_slice %arg4[%c26_i32_135, %c0_i32_136] : memref<32x128xf32, #tpu.memory_space<vmem>> -> memref<1x128xf32, #tpu.memory_space<vmem>>
    %138 = tpu.memref_slice %arg5[%c26_i32] : memref<32x!tpu.dma_semaphore, #tpu.memory_space<semaphore_mem>> -> memref<1x!tpu.dma_semaphore, #tpu.memory_space<semaphore_mem>>
    %139 = tpu.memref_squeeze %138 : memref<1x!tpu.dma_semaphore, #tpu.memory_space<semaphore_mem>> -> memref<!tpu.dma_semaphore, #tpu.memory_space<semaphore_mem>>
    tpu.enqueue_dma source(%136 : memref<1x128xf32, #tpu.memory_space<any>>) target(%137 : memref<1x128xf32, #tpu.memory_space<vmem>>) target_semaphore(%139 : memref<!tpu.dma_semaphore, #tpu.memory_space<semaphore_mem>>)
    %c27_i32 = arith.constant 27 : i32
    %c0_i32_137 = arith.constant 0 : i32
    %140 = tpu.memref_slice %arg2[%27, %c0_i32_137] : memref<2000x128xf32, #tpu.memory_space<any>> -> memref<1x128xf32, #tpu.memory_space<any>>
    %c27_i32_138 = arith.constant 27 : i32
    %c0_i32_139 = arith.constant 0 : i32
    %141 = tpu.memref_slice %arg4[%c27_i32_138, %c0_i32_139] : memref<32x128xf32, #tpu.memory_space<vmem>> -> memref<1x128xf32, #tpu.memory_space<vmem>>
    %142 = tpu.memref_slice %arg5[%c27_i32] : memref<32x!tpu.dma_semaphore, #tpu.memory_space<semaphore_mem>> -> memref<1x!tpu.dma_semaphore, #tpu.memory_space<semaphore_mem>>
    %143 = tpu.memref_squeeze %142 : memref<1x!tpu.dma_semaphore, #tpu.memory_space<semaphore_mem>> -> memref<!tpu.dma_semaphore, #tpu.memory_space<semaphore_mem>>
    tpu.enqueue_dma source(%140 : memref<1x128xf32, #tpu.memory_space<any>>) target(%141 : memref<1x128xf32, #tpu.memory_space<vmem>>) target_semaphore(%143 : memref<!tpu.dma_semaphore, #tpu.memory_space<semaphore_mem>>)
    %c28_i32 = arith.constant 28 : i32
    %c0_i32_140 = arith.constant 0 : i32
    %144 = tpu.memref_slice %arg2[%28, %c0_i32_140] : memref<2000x128xf32, #tpu.memory_space<any>> -> memref<1x128xf32, #tpu.memory_space<any>>
    %c28_i32_141 = arith.constant 28 : i32
    %c0_i32_142 = arith.constant 0 : i32
    %145 = tpu.memref_slice %arg4[%c28_i32_141, %c0_i32_142] : memref<32x128xf32, #tpu.memory_space<vmem>> -> memref<1x128xf32, #tpu.memory_space<vmem>>
    %146 = tpu.memref_slice %arg5[%c28_i32] : memref<32x!tpu.dma_semaphore, #tpu.memory_space<semaphore_mem>> -> memref<1x!tpu.dma_semaphore, #tpu.memory_space<semaphore_mem>>
    %147 = tpu.memref_squeeze %146 : memref<1x!tpu.dma_semaphore, #tpu.memory_space<semaphore_mem>> -> memref<!tpu.dma_semaphore, #tpu.memory_space<semaphore_mem>>
    tpu.enqueue_dma source(%144 : memref<1x128xf32, #tpu.memory_space<any>>) target(%145 : memref<1x128xf32, #tpu.memory_space<vmem>>) target_semaphore(%147 : memref<!tpu.dma_semaphore, #tpu.memory_space<semaphore_mem>>)
    %c29_i32 = arith.constant 29 : i32
    %c0_i32_143 = arith.constant 0 : i32
    %148 = tpu.memref_slice %arg2[%29, %c0_i32_143] : memref<2000x128xf32, #tpu.memory_space<any>> -> memref<1x128xf32, #tpu.memory_space<any>>
    %c29_i32_144 = arith.constant 29 : i32
    %c0_i32_145 = arith.constant 0 : i32
    %149 = tpu.memref_slice %arg4[%c29_i32_144, %c0_i32_145] : memref<32x128xf32, #tpu.memory_space<vmem>> -> memref<1x128xf32, #tpu.memory_space<vmem>>
    %150 = tpu.memref_slice %arg5[%c29_i32] : memref<32x!tpu.dma_semaphore, #tpu.memory_space<semaphore_mem>> -> memref<1x!tpu.dma_semaphore, #tpu.memory_space<semaphore_mem>>
    %151 = tpu.memref_squeeze %150 : memref<1x!tpu.dma_semaphore, #tpu.memory_space<semaphore_mem>> -> memref<!tpu.dma_semaphore, #tpu.memory_space<semaphore_mem>>
    tpu.enqueue_dma source(%148 : memref<1x128xf32, #tpu.memory_space<any>>) target(%149 : memref<1x128xf32, #tpu.memory_space<vmem>>) target_semaphore(%151 : memref<!tpu.dma_semaphore, #tpu.memory_space<semaphore_mem>>)
    %c30_i32 = arith.constant 30 : i32
    %c0_i32_146 = arith.constant 0 : i32
    %152 = tpu.memref_slice %arg2[%30, %c0_i32_146] : memref<2000x128xf32, #tpu.memory_space<any>> -> memref<1x128xf32, #tpu.memory_space<any>>
    %c30_i32_147 = arith.constant 30 : i32
    %c0_i32_148 = arith.constant 0 : i32
    %153 = tpu.memref_slice %arg4[%c30_i32_147, %c0_i32_148] : memref<32x128xf32, #tpu.memory_space<vmem>> -> memref<1x128xf32, #tpu.memory_space<vmem>>
    %154 = tpu.memref_slice %arg5[%c30_i32] : memref<32x!tpu.dma_semaphore, #tpu.memory_space<semaphore_mem>> -> memref<1x!tpu.dma_semaphore, #tpu.memory_space<semaphore_mem>>
    %155 = tpu.memref_squeeze %154 : memref<1x!tpu.dma_semaphore, #tpu.memory_space<semaphore_mem>> -> memref<!tpu.dma_semaphore, #tpu.memory_space<semaphore_mem>>
    tpu.enqueue_dma source(%152 : memref<1x128xf32, #tpu.memory_space<any>>) target(%153 : memref<1x128xf32, #tpu.memory_space<vmem>>) target_semaphore(%155 : memref<!tpu.dma_semaphore, #tpu.memory_space<semaphore_mem>>)
    %c31_i32 = arith.constant 31 : i32
    %c0_i32_149 = arith.constant 0 : i32
    %156 = tpu.memref_slice %arg2[%31, %c0_i32_149] : memref<2000x128xf32, #tpu.memory_space<any>> -> memref<1x128xf32, #tpu.memory_space<any>>
    %c31_i32_150 = arith.constant 31 : i32
    %c0_i32_151 = arith.constant 0 : i32
    %157 = tpu.memref_slice %arg4[%c31_i32_150, %c0_i32_151] : memref<32x128xf32, #tpu.memory_space<vmem>> -> memref<1x128xf32, #tpu.memory_space<vmem>>
    %158 = tpu.memref_slice %arg5[%c31_i32] : memref<32x!tpu.dma_semaphore, #tpu.memory_space<semaphore_mem>> -> memref<1x!tpu.dma_semaphore, #tpu.memory_space<semaphore_mem>>
    %159 = tpu.memref_squeeze %158 : memref<1x!tpu.dma_semaphore, #tpu.memory_space<semaphore_mem>> -> memref<!tpu.dma_semaphore, #tpu.memory_space<semaphore_mem>>
    tpu.enqueue_dma source(%156 : memref<1x128xf32, #tpu.memory_space<any>>) target(%157 : memref<1x128xf32, #tpu.memory_space<vmem>>) target_semaphore(%159 : memref<!tpu.dma_semaphore, #tpu.memory_space<semaphore_mem>>)
    %c0_i32_152 = arith.constant 0 : i32
    %c0_i32_153 = arith.constant 0 : i32
    %160 = tpu.memref_slice %arg2[%0, %c0_i32_153] : memref<2000x128xf32, #tpu.memory_space<any>> -> memref<1x128xf32, #tpu.memory_space<any>>
    %c0_i32_154 = arith.constant 0 : i32
    %c0_i32_155 = arith.constant 0 : i32
    %161 = tpu.memref_slice %arg4[%c0_i32_154, %c0_i32_155] : memref<32x128xf32, #tpu.memory_space<vmem>> -> memref<1x128xf32, #tpu.memory_space<vmem>>
    %162 = tpu.memref_slice %arg5[%c0_i32_152] : memref<32x!tpu.dma_semaphore, #tpu.memory_space<semaphore_mem>> -> memref<1x!tpu.dma_semaphore, #tpu.memory_space<semaphore_mem>>
    %163 = tpu.memref_squeeze %162 : memref<1x!tpu.dma_semaphore, #tpu.memory_space<semaphore_mem>> -> memref<!tpu.dma_semaphore, #tpu.memory_space<semaphore_mem>>
    tpu.wait_dma2 semaphore(%163 : memref<!tpu.dma_semaphore, #tpu.memory_space<semaphore_mem>>) src(%160 : memref<1x128xf32, #tpu.memory_space<any>>) dst(%161 : memref<1x128xf32, #tpu.memory_space<vmem>>)
    %c1_i32_156 = arith.constant 1 : i32
    %c0_i32_157 = arith.constant 0 : i32
    %164 = tpu.memref_slice %arg2[%1, %c0_i32_157] : memref<2000x128xf32, #tpu.memory_space<any>> -> memref<1x128xf32, #tpu.memory_space<any>>
    %c1_i32_158 = arith.constant 1 : i32
    %c0_i32_159 = arith.constant 0 : i32
    %165 = tpu.memref_slice %arg4[%c1_i32_158, %c0_i32_159] : memref<32x128xf32, #tpu.memory_space<vmem>> -> memref<1x128xf32, #tpu.memory_space<vmem>>
    %166 = tpu.memref_slice %arg5[%c1_i32_156] : memref<32x!tpu.dma_semaphore, #tpu.memory_space<semaphore_mem>> -> memref<1x!tpu.dma_semaphore, #tpu.memory_space<semaphore_mem>>
    %167 = tpu.memref_squeeze %166 : memref<1x!tpu.dma_semaphore, #tpu.memory_space<semaphore_mem>> -> memref<!tpu.dma_semaphore, #tpu.memory_space<semaphore_mem>>
    tpu.wait_dma2 semaphore(%167 : memref<!tpu.dma_semaphore, #tpu.memory_space<semaphore_mem>>) src(%164 : memref<1x128xf32, #tpu.memory_space<any>>) dst(%165 : memref<1x128xf32, #tpu.memory_space<vmem>>)
    %c2_i32_160 = arith.constant 2 : i32
    %c0_i32_161 = arith.constant 0 : i32
    %168 = tpu.memref_slice %arg2[%2, %c0_i32_161] : memref<2000x128xf32, #tpu.memory_space<any>> -> memref<1x128xf32, #tpu.memory_space<any>>
    %c2_i32_162 = arith.constant 2 : i32
    %c0_i32_163 = arith.constant 0 : i32
    %169 = tpu.memref_slice %arg4[%c2_i32_162, %c0_i32_163] : memref<32x128xf32, #tpu.memory_space<vmem>> -> memref<1x128xf32, #tpu.memory_space<vmem>>
    %170 = tpu.memref_slice %arg5[%c2_i32_160] : memref<32x!tpu.dma_semaphore, #tpu.memory_space<semaphore_mem>> -> memref<1x!tpu.dma_semaphore, #tpu.memory_space<semaphore_mem>>
    %171 = tpu.memref_squeeze %170 : memref<1x!tpu.dma_semaphore, #tpu.memory_space<semaphore_mem>> -> memref<!tpu.dma_semaphore, #tpu.memory_space<semaphore_mem>>
    tpu.wait_dma2 semaphore(%171 : memref<!tpu.dma_semaphore, #tpu.memory_space<semaphore_mem>>) src(%168 : memref<1x128xf32, #tpu.memory_space<any>>) dst(%169 : memref<1x128xf32, #tpu.memory_space<vmem>>)
    %c3_i32_164 = arith.constant 3 : i32
    %c0_i32_165 = arith.constant 0 : i32
    %172 = tpu.memref_slice %arg2[%3, %c0_i32_165] : memref<2000x128xf32, #tpu.memory_space<any>> -> memref<1x128xf32, #tpu.memory_space<any>>
    %c3_i32_166 = arith.constant 3 : i32
    %c0_i32_167 = arith.constant 0 : i32
    %173 = tpu.memref_slice %arg4[%c3_i32_166, %c0_i32_167] : memref<32x128xf32, #tpu.memory_space<vmem>> -> memref<1x128xf32, #tpu.memory_space<vmem>>
    %174 = tpu.memref_slice %arg5[%c3_i32_164] : memref<32x!tpu.dma_semaphore, #tpu.memory_space<semaphore_mem>> -> memref<1x!tpu.dma_semaphore, #tpu.memory_space<semaphore_mem>>
    %175 = tpu.memref_squeeze %174 : memref<1x!tpu.dma_semaphore, #tpu.memory_space<semaphore_mem>> -> memref<!tpu.dma_semaphore, #tpu.memory_space<semaphore_mem>>
    tpu.wait_dma2 semaphore(%175 : memref<!tpu.dma_semaphore, #tpu.memory_space<semaphore_mem>>) src(%172 : memref<1x128xf32, #tpu.memory_space<any>>) dst(%173 : memref<1x128xf32, #tpu.memory_space<vmem>>)
    %c4_i32_168 = arith.constant 4 : i32
    %c0_i32_169 = arith.constant 0 : i32
    %176 = tpu.memref_slice %arg2[%4, %c0_i32_169] : memref<2000x128xf32, #tpu.memory_space<any>> -> memref<1x128xf32, #tpu.memory_space<any>>
    %c4_i32_170 = arith.constant 4 : i32
    %c0_i32_171 = arith.constant 0 : i32
    %177 = tpu.memref_slice %arg4[%c4_i32_170, %c0_i32_171] : memref<32x128xf32, #tpu.memory_space<vmem>> -> memref<1x128xf32, #tpu.memory_space<vmem>>
    %178 = tpu.memref_slice %arg5[%c4_i32_168] : memref<32x!tpu.dma_semaphore, #tpu.memory_space<semaphore_mem>> -> memref<1x!tpu.dma_semaphore, #tpu.memory_space<semaphore_mem>>
    %179 = tpu.memref_squeeze %178 : memref<1x!tpu.dma_semaphore, #tpu.memory_space<semaphore_mem>> -> memref<!tpu.dma_semaphore, #tpu.memory_space<semaphore_mem>>
    tpu.wait_dma2 semaphore(%179 : memref<!tpu.dma_semaphore, #tpu.memory_space<semaphore_mem>>) src(%176 : memref<1x128xf32, #tpu.memory_space<any>>) dst(%177 : memref<1x128xf32, #tpu.memory_space<vmem>>)
    %c5_i32_172 = arith.constant 5 : i32
    %c0_i32_173 = arith.constant 0 : i32
    %180 = tpu.memref_slice %arg2[%5, %c0_i32_173] : memref<2000x128xf32, #tpu.memory_space<any>> -> memref<1x128xf32, #tpu.memory_space<any>>
    %c5_i32_174 = arith.constant 5 : i32
    %c0_i32_175 = arith.constant 0 : i32
    %181 = tpu.memref_slice %arg4[%c5_i32_174, %c0_i32_175] : memref<32x128xf32, #tpu.memory_space<vmem>> -> memref<1x128xf32, #tpu.memory_space<vmem>>
    %182 = tpu.memref_slice %arg5[%c5_i32_172] : memref<32x!tpu.dma_semaphore, #tpu.memory_space<semaphore_mem>> -> memref<1x!tpu.dma_semaphore, #tpu.memory_space<semaphore_mem>>
    %183 = tpu.memref_squeeze %182 : memref<1x!tpu.dma_semaphore, #tpu.memory_space<semaphore_mem>> -> memref<!tpu.dma_semaphore, #tpu.memory_space<semaphore_mem>>
    tpu.wait_dma2 semaphore(%183 : memref<!tpu.dma_semaphore, #tpu.memory_space<semaphore_mem>>) src(%180 : memref<1x128xf32, #tpu.memory_space<any>>) dst(%181 : memref<1x128xf32, #tpu.memory_space<vmem>>)
    %c6_i32_176 = arith.constant 6 : i32
    %c0_i32_177 = arith.constant 0 : i32
    %184 = tpu.memref_slice %arg2[%6, %c0_i32_177] : memref<2000x128xf32, #tpu.memory_space<any>> -> memref<1x128xf32, #tpu.memory_space<any>>
    %c6_i32_178 = arith.constant 6 : i32
    %c0_i32_179 = arith.constant 0 : i32
    %185 = tpu.memref_slice %arg4[%c6_i32_178, %c0_i32_179] : memref<32x128xf32, #tpu.memory_space<vmem>> -> memref<1x128xf32, #tpu.memory_space<vmem>>
    %186 = tpu.memref_slice %arg5[%c6_i32_176] : memref<32x!tpu.dma_semaphore, #tpu.memory_space<semaphore_mem>> -> memref<1x!tpu.dma_semaphore, #tpu.memory_space<semaphore_mem>>
    %187 = tpu.memref_squeeze %186 : memref<1x!tpu.dma_semaphore, #tpu.memory_space<semaphore_mem>> -> memref<!tpu.dma_semaphore, #tpu.memory_space<semaphore_mem>>
    tpu.wait_dma2 semaphore(%187 : memref<!tpu.dma_semaphore, #tpu.memory_space<semaphore_mem>>) src(%184 : memref<1x128xf32, #tpu.memory_space<any>>) dst(%185 : memref<1x128xf32, #tpu.memory_space<vmem>>)
    %c7_i32_180 = arith.constant 7 : i32
    %c0_i32_181 = arith.constant 0 : i32
    %188 = tpu.memref_slice %arg2[%7, %c0_i32_181] : memref<2000x128xf32, #tpu.memory_space<any>> -> memref<1x128xf32, #tpu.memory_space<any>>
    %c7_i32_182 = arith.constant 7 : i32
    %c0_i32_183 = arith.constant 0 : i32
    %189 = tpu.memref_slice %arg4[%c7_i32_182, %c0_i32_183] : memref<32x128xf32, #tpu.memory_space<vmem>> -> memref<1x128xf32, #tpu.memory_space<vmem>>
    %190 = tpu.memref_slice %arg5[%c7_i32_180] : memref<32x!tpu.dma_semaphore, #tpu.memory_space<semaphore_mem>> -> memref<1x!tpu.dma_semaphore, #tpu.memory_space<semaphore_mem>>
    %191 = tpu.memref_squeeze %190 : memref<1x!tpu.dma_semaphore, #tpu.memory_space<semaphore_mem>> -> memref<!tpu.dma_semaphore, #tpu.memory_space<semaphore_mem>>
    tpu.wait_dma2 semaphore(%191 : memref<!tpu.dma_semaphore, #tpu.memory_space<semaphore_mem>>) src(%188 : memref<1x128xf32, #tpu.memory_space<any>>) dst(%189 : memref<1x128xf32, #tpu.memory_space<vmem>>)
    %c8_i32_184 = arith.constant 8 : i32
    %c0_i32_185 = arith.constant 0 : i32
    %192 = tpu.memref_slice %arg2[%8, %c0_i32_185] : memref<2000x128xf32, #tpu.memory_space<any>> -> memref<1x128xf32, #tpu.memory_space<any>>
    %c8_i32_186 = arith.constant 8 : i32
    %c0_i32_187 = arith.constant 0 : i32
    %193 = tpu.memref_slice %arg4[%c8_i32_186, %c0_i32_187] : memref<32x128xf32, #tpu.memory_space<vmem>> -> memref<1x128xf32, #tpu.memory_space<vmem>>
    %194 = tpu.memref_slice %arg5[%c8_i32_184] : memref<32x!tpu.dma_semaphore, #tpu.memory_space<semaphore_mem>> -> memref<1x!tpu.dma_semaphore, #tpu.memory_space<semaphore_mem>>
    %195 = tpu.memref_squeeze %194 : memref<1x!tpu.dma_semaphore, #tpu.memory_space<semaphore_mem>> -> memref<!tpu.dma_semaphore, #tpu.memory_space<semaphore_mem>>
    tpu.wait_dma2 semaphore(%195 : memref<!tpu.dma_semaphore, #tpu.memory_space<semaphore_mem>>) src(%192 : memref<1x128xf32, #tpu.memory_space<any>>) dst(%193 : memref<1x128xf32, #tpu.memory_space<vmem>>)
    %c9_i32_188 = arith.constant 9 : i32
    %c0_i32_189 = arith.constant 0 : i32
    %196 = tpu.memref_slice %arg2[%9, %c0_i32_189] : memref<2000x128xf32, #tpu.memory_space<any>> -> memref<1x128xf32, #tpu.memory_space<any>>
    %c9_i32_190 = arith.constant 9 : i32
    %c0_i32_191 = arith.constant 0 : i32
    %197 = tpu.memref_slice %arg4[%c9_i32_190, %c0_i32_191] : memref<32x128xf32, #tpu.memory_space<vmem>> -> memref<1x128xf32, #tpu.memory_space<vmem>>
    %198 = tpu.memref_slice %arg5[%c9_i32_188] : memref<32x!tpu.dma_semaphore, #tpu.memory_space<semaphore_mem>> -> memref<1x!tpu.dma_semaphore, #tpu.memory_space<semaphore_mem>>
    %199 = tpu.memref_squeeze %198 : memref<1x!tpu.dma_semaphore, #tpu.memory_space<semaphore_mem>> -> memref<!tpu.dma_semaphore, #tpu.memory_space<semaphore_mem>>
    tpu.wait_dma2 semaphore(%199 : memref<!tpu.dma_semaphore, #tpu.memory_space<semaphore_mem>>) src(%196 : memref<1x128xf32, #tpu.memory_space<any>>) dst(%197 : memref<1x128xf32, #tpu.memory_space<vmem>>)
    %c10_i32_192 = arith.constant 10 : i32
    %c0_i32_193 = arith.constant 0 : i32
    %200 = tpu.memref_slice %arg2[%10, %c0_i32_193] : memref<2000x128xf32, #tpu.memory_space<any>> -> memref<1x128xf32, #tpu.memory_space<any>>
    %c10_i32_194 = arith.constant 10 : i32
    %c0_i32_195 = arith.constant 0 : i32
    %201 = tpu.memref_slice %arg4[%c10_i32_194, %c0_i32_195] : memref<32x128xf32, #tpu.memory_space<vmem>> -> memref<1x128xf32, #tpu.memory_space<vmem>>
    %202 = tpu.memref_slice %arg5[%c10_i32_192] : memref<32x!tpu.dma_semaphore, #tpu.memory_space<semaphore_mem>> -> memref<1x!tpu.dma_semaphore, #tpu.memory_space<semaphore_mem>>
    %203 = tpu.memref_squeeze %202 : memref<1x!tpu.dma_semaphore, #tpu.memory_space<semaphore_mem>> -> memref<!tpu.dma_semaphore, #tpu.memory_space<semaphore_mem>>
    tpu.wait_dma2 semaphore(%203 : memref<!tpu.dma_semaphore, #tpu.memory_space<semaphore_mem>>) src(%200 : memref<1x128xf32, #tpu.memory_space<any>>) dst(%201 : memref<1x128xf32, #tpu.memory_space<vmem>>)
    %c11_i32_196 = arith.constant 11 : i32
    %c0_i32_197 = arith.constant 0 : i32
    %204 = tpu.memref_slice %arg2[%11, %c0_i32_197] : memref<2000x128xf32, #tpu.memory_space<any>> -> memref<1x128xf32, #tpu.memory_space<any>>
    %c11_i32_198 = arith.constant 11 : i32
    %c0_i32_199 = arith.constant 0 : i32
    %205 = tpu.memref_slice %arg4[%c11_i32_198, %c0_i32_199] : memref<32x128xf32, #tpu.memory_space<vmem>> -> memref<1x128xf32, #tpu.memory_space<vmem>>
    %206 = tpu.memref_slice %arg5[%c11_i32_196] : memref<32x!tpu.dma_semaphore, #tpu.memory_space<semaphore_mem>> -> memref<1x!tpu.dma_semaphore, #tpu.memory_space<semaphore_mem>>
    %207 = tpu.memref_squeeze %206 : memref<1x!tpu.dma_semaphore, #tpu.memory_space<semaphore_mem>> -> memref<!tpu.dma_semaphore, #tpu.memory_space<semaphore_mem>>
    tpu.wait_dma2 semaphore(%207 : memref<!tpu.dma_semaphore, #tpu.memory_space<semaphore_mem>>) src(%204 : memref<1x128xf32, #tpu.memory_space<any>>) dst(%205 : memref<1x128xf32, #tpu.memory_space<vmem>>)
    %c12_i32_200 = arith.constant 12 : i32
    %c0_i32_201 = arith.constant 0 : i32
    %208 = tpu.memref_slice %arg2[%12, %c0_i32_201] : memref<2000x128xf32, #tpu.memory_space<any>> -> memref<1x128xf32, #tpu.memory_space<any>>
    %c12_i32_202 = arith.constant 12 : i32
    %c0_i32_203 = arith.constant 0 : i32
    %209 = tpu.memref_slice %arg4[%c12_i32_202, %c0_i32_203] : memref<32x128xf32, #tpu.memory_space<vmem>> -> memref<1x128xf32, #tpu.memory_space<vmem>>
    %210 = tpu.memref_slice %arg5[%c12_i32_200] : memref<32x!tpu.dma_semaphore, #tpu.memory_space<semaphore_mem>> -> memref<1x!tpu.dma_semaphore, #tpu.memory_space<semaphore_mem>>
    %211 = tpu.memref_squeeze %210 : memref<1x!tpu.dma_semaphore, #tpu.memory_space<semaphore_mem>> -> memref<!tpu.dma_semaphore, #tpu.memory_space<semaphore_mem>>
    tpu.wait_dma2 semaphore(%211 : memref<!tpu.dma_semaphore, #tpu.memory_space<semaphore_mem>>) src(%208 : memref<1x128xf32, #tpu.memory_space<any>>) dst(%209 : memref<1x128xf32, #tpu.memory_space<vmem>>)
    %c13_i32_204 = arith.constant 13 : i32
    %c0_i32_205 = arith.constant 0 : i32
    %212 = tpu.memref_slice %arg2[%13, %c0_i32_205] : memref<2000x128xf32, #tpu.memory_space<any>> -> memref<1x128xf32, #tpu.memory_space<any>>
    %c13_i32_206 = arith.constant 13 : i32
    %c0_i32_207 = arith.constant 0 : i32
    %213 = tpu.memref_slice %arg4[%c13_i32_206, %c0_i32_207] : memref<32x128xf32, #tpu.memory_space<vmem>> -> memref<1x128xf32, #tpu.memory_space<vmem>>
    %214 = tpu.memref_slice %arg5[%c13_i32_204] : memref<32x!tpu.dma_semaphore, #tpu.memory_space<semaphore_mem>> -> memref<1x!tpu.dma_semaphore, #tpu.memory_space<semaphore_mem>>
    %215 = tpu.memref_squeeze %214 : memref<1x!tpu.dma_semaphore, #tpu.memory_space<semaphore_mem>> -> memref<!tpu.dma_semaphore, #tpu.memory_space<semaphore_mem>>
    tpu.wait_dma2 semaphore(%215 : memref<!tpu.dma_semaphore, #tpu.memory_space<semaphore_mem>>) src(%212 : memref<1x128xf32, #tpu.memory_space<any>>) dst(%213 : memref<1x128xf32, #tpu.memory_space<vmem>>)
    %c14_i32_208 = arith.constant 14 : i32
    %c0_i32_209 = arith.constant 0 : i32
    %216 = tpu.memref_slice %arg2[%14, %c0_i32_209] : memref<2000x128xf32, #tpu.memory_space<any>> -> memref<1x128xf32, #tpu.memory_space<any>>
    %c14_i32_210 = arith.constant 14 : i32
    %c0_i32_211 = arith.constant 0 : i32
    %217 = tpu.memref_slice %arg4[%c14_i32_210, %c0_i32_211] : memref<32x128xf32, #tpu.memory_space<vmem>> -> memref<1x128xf32, #tpu.memory_space<vmem>>
    %218 = tpu.memref_slice %arg5[%c14_i32_208] : memref<32x!tpu.dma_semaphore, #tpu.memory_space<semaphore_mem>> -> memref<1x!tpu.dma_semaphore, #tpu.memory_space<semaphore_mem>>
    %219 = tpu.memref_squeeze %218 : memref<1x!tpu.dma_semaphore, #tpu.memory_space<semaphore_mem>> -> memref<!tpu.dma_semaphore, #tpu.memory_space<semaphore_mem>>
    tpu.wait_dma2 semaphore(%219 : memref<!tpu.dma_semaphore, #tpu.memory_space<semaphore_mem>>) src(%216 : memref<1x128xf32, #tpu.memory_space<any>>) dst(%217 : memref<1x128xf32, #tpu.memory_space<vmem>>)
    %c15_i32_212 = arith.constant 15 : i32
    %c0_i32_213 = arith.constant 0 : i32
    %220 = tpu.memref_slice %arg2[%15, %c0_i32_213] : memref<2000x128xf32, #tpu.memory_space<any>> -> memref<1x128xf32, #tpu.memory_space<any>>
    %c15_i32_214 = arith.constant 15 : i32
    %c0_i32_215 = arith.constant 0 : i32
    %221 = tpu.memref_slice %arg4[%c15_i32_214, %c0_i32_215] : memref<32x128xf32, #tpu.memory_space<vmem>> -> memref<1x128xf32, #tpu.memory_space<vmem>>
    %222 = tpu.memref_slice %arg5[%c15_i32_212] : memref<32x!tpu.dma_semaphore, #tpu.memory_space<semaphore_mem>> -> memref<1x!tpu.dma_semaphore, #tpu.memory_space<semaphore_mem>>
    %223 = tpu.memref_squeeze %222 : memref<1x!tpu.dma_semaphore, #tpu.memory_space<semaphore_mem>> -> memref<!tpu.dma_semaphore, #tpu.memory_space<semaphore_mem>>
    tpu.wait_dma2 semaphore(%223 : memref<!tpu.dma_semaphore, #tpu.memory_space<semaphore_mem>>) src(%220 : memref<1x128xf32, #tpu.memory_space<any>>) dst(%221 : memref<1x128xf32, #tpu.memory_space<vmem>>)
    %c16_i32_216 = arith.constant 16 : i32
    %c0_i32_217 = arith.constant 0 : i32
    %224 = tpu.memref_slice %arg2[%16, %c0_i32_217] : memref<2000x128xf32, #tpu.memory_space<any>> -> memref<1x128xf32, #tpu.memory_space<any>>
    %c16_i32_218 = arith.constant 16 : i32
    %c0_i32_219 = arith.constant 0 : i32
    %225 = tpu.memref_slice %arg4[%c16_i32_218, %c0_i32_219] : memref<32x128xf32, #tpu.memory_space<vmem>> -> memref<1x128xf32, #tpu.memory_space<vmem>>
    %226 = tpu.memref_slice %arg5[%c16_i32_216] : memref<32x!tpu.dma_semaphore, #tpu.memory_space<semaphore_mem>> -> memref<1x!tpu.dma_semaphore, #tpu.memory_space<semaphore_mem>>
    %227 = tpu.memref_squeeze %226 : memref<1x!tpu.dma_semaphore, #tpu.memory_space<semaphore_mem>> -> memref<!tpu.dma_semaphore, #tpu.memory_space<semaphore_mem>>
    tpu.wait_dma2 semaphore(%227 : memref<!tpu.dma_semaphore, #tpu.memory_space<semaphore_mem>>) src(%224 : memref<1x128xf32, #tpu.memory_space<any>>) dst(%225 : memref<1x128xf32, #tpu.memory_space<vmem>>)
    %c17_i32_220 = arith.constant 17 : i32
    %c0_i32_221 = arith.constant 0 : i32
    %228 = tpu.memref_slice %arg2[%17, %c0_i32_221] : memref<2000x128xf32, #tpu.memory_space<any>> -> memref<1x128xf32, #tpu.memory_space<any>>
    %c17_i32_222 = arith.constant 17 : i32
    %c0_i32_223 = arith.constant 0 : i32
    %229 = tpu.memref_slice %arg4[%c17_i32_222, %c0_i32_223] : memref<32x128xf32, #tpu.memory_space<vmem>> -> memref<1x128xf32, #tpu.memory_space<vmem>>
    %230 = tpu.memref_slice %arg5[%c17_i32_220] : memref<32x!tpu.dma_semaphore, #tpu.memory_space<semaphore_mem>> -> memref<1x!tpu.dma_semaphore, #tpu.memory_space<semaphore_mem>>
    %231 = tpu.memref_squeeze %230 : memref<1x!tpu.dma_semaphore, #tpu.memory_space<semaphore_mem>> -> memref<!tpu.dma_semaphore, #tpu.memory_space<semaphore_mem>>
    tpu.wait_dma2 semaphore(%231 : memref<!tpu.dma_semaphore, #tpu.memory_space<semaphore_mem>>) src(%228 : memref<1x128xf32, #tpu.memory_space<any>>) dst(%229 : memref<1x128xf32, #tpu.memory_space<vmem>>)
    %c18_i32_224 = arith.constant 18 : i32
    %c0_i32_225 = arith.constant 0 : i32
    %232 = tpu.memref_slice %arg2[%18, %c0_i32_225] : memref<2000x128xf32, #tpu.memory_space<any>> -> memref<1x128xf32, #tpu.memory_space<any>>
    %c18_i32_226 = arith.constant 18 : i32
    %c0_i32_227 = arith.constant 0 : i32
    %233 = tpu.memref_slice %arg4[%c18_i32_226, %c0_i32_227] : memref<32x128xf32, #tpu.memory_space<vmem>> -> memref<1x128xf32, #tpu.memory_space<vmem>>
    %234 = tpu.memref_slice %arg5[%c18_i32_224] : memref<32x!tpu.dma_semaphore, #tpu.memory_space<semaphore_mem>> -> memref<1x!tpu.dma_semaphore, #tpu.memory_space<semaphore_mem>>
    %235 = tpu.memref_squeeze %234 : memref<1x!tpu.dma_semaphore, #tpu.memory_space<semaphore_mem>> -> memref<!tpu.dma_semaphore, #tpu.memory_space<semaphore_mem>>
    tpu.wait_dma2 semaphore(%235 : memref<!tpu.dma_semaphore, #tpu.memory_space<semaphore_mem>>) src(%232 : memref<1x128xf32, #tpu.memory_space<any>>) dst(%233 : memref<1x128xf32, #tpu.memory_space<vmem>>)
    %c19_i32_228 = arith.constant 19 : i32
    %c0_i32_229 = arith.constant 0 : i32
    %236 = tpu.memref_slice %arg2[%19, %c0_i32_229] : memref<2000x128xf32, #tpu.memory_space<any>> -> memref<1x128xf32, #tpu.memory_space<any>>
    %c19_i32_230 = arith.constant 19 : i32
    %c0_i32_231 = arith.constant 0 : i32
    %237 = tpu.memref_slice %arg4[%c19_i32_230, %c0_i32_231] : memref<32x128xf32, #tpu.memory_space<vmem>> -> memref<1x128xf32, #tpu.memory_space<vmem>>
    %238 = tpu.memref_slice %arg5[%c19_i32_228] : memref<32x!tpu.dma_semaphore, #tpu.memory_space<semaphore_mem>> -> memref<1x!tpu.dma_semaphore, #tpu.memory_space<semaphore_mem>>
    %239 = tpu.memref_squeeze %238 : memref<1x!tpu.dma_semaphore, #tpu.memory_space<semaphore_mem>> -> memref<!tpu.dma_semaphore, #tpu.memory_space<semaphore_mem>>
    tpu.wait_dma2 semaphore(%239 : memref<!tpu.dma_semaphore, #tpu.memory_space<semaphore_mem>>) src(%236 : memref<1x128xf32, #tpu.memory_space<any>>) dst(%237 : memref<1x128xf32, #tpu.memory_space<vmem>>)
    %c20_i32_232 = arith.constant 20 : i32
    %c0_i32_233 = arith.constant 0 : i32
    %240 = tpu.memref_slice %arg2[%20, %c0_i32_233] : memref<2000x128xf32, #tpu.memory_space<any>> -> memref<1x128xf32, #tpu.memory_space<any>>
    %c20_i32_234 = arith.constant 20 : i32
    %c0_i32_235 = arith.constant 0 : i32
    %241 = tpu.memref_slice %arg4[%c20_i32_234, %c0_i32_235] : memref<32x128xf32, #tpu.memory_space<vmem>> -> memref<1x128xf32, #tpu.memory_space<vmem>>
    %242 = tpu.memref_slice %arg5[%c20_i32_232] : memref<32x!tpu.dma_semaphore, #tpu.memory_space<semaphore_mem>> -> memref<1x!tpu.dma_semaphore, #tpu.memory_space<semaphore_mem>>
    %243 = tpu.memref_squeeze %242 : memref<1x!tpu.dma_semaphore, #tpu.memory_space<semaphore_mem>> -> memref<!tpu.dma_semaphore, #tpu.memory_space<semaphore_mem>>
    tpu.wait_dma2 semaphore(%243 : memref<!tpu.dma_semaphore, #tpu.memory_space<semaphore_mem>>) src(%240 : memref<1x128xf32, #tpu.memory_space<any>>) dst(%241 : memref<1x128xf32, #tpu.memory_space<vmem>>)
    %c21_i32_236 = arith.constant 21 : i32
    %c0_i32_237 = arith.constant 0 : i32
    %244 = tpu.memref_slice %arg2[%21, %c0_i32_237] : memref<2000x128xf32, #tpu.memory_space<any>> -> memref<1x128xf32, #tpu.memory_space<any>>
    %c21_i32_238 = arith.constant 21 : i32
    %c0_i32_239 = arith.constant 0 : i32
    %245 = tpu.memref_slice %arg4[%c21_i32_238, %c0_i32_239] : memref<32x128xf32, #tpu.memory_space<vmem>> -> memref<1x128xf32, #tpu.memory_space<vmem>>
    %246 = tpu.memref_slice %arg5[%c21_i32_236] : memref<32x!tpu.dma_semaphore, #tpu.memory_space<semaphore_mem>> -> memref<1x!tpu.dma_semaphore, #tpu.memory_space<semaphore_mem>>
    %247 = tpu.memref_squeeze %246 : memref<1x!tpu.dma_semaphore, #tpu.memory_space<semaphore_mem>> -> memref<!tpu.dma_semaphore, #tpu.memory_space<semaphore_mem>>
    tpu.wait_dma2 semaphore(%247 : memref<!tpu.dma_semaphore, #tpu.memory_space<semaphore_mem>>) src(%244 : memref<1x128xf32, #tpu.memory_space<any>>) dst(%245 : memref<1x128xf32, #tpu.memory_space<vmem>>)
    %c22_i32_240 = arith.constant 22 : i32
    %c0_i32_241 = arith.constant 0 : i32
    %248 = tpu.memref_slice %arg2[%22, %c0_i32_241] : memref<2000x128xf32, #tpu.memory_space<any>> -> memref<1x128xf32, #tpu.memory_space<any>>
    %c22_i32_242 = arith.constant 22 : i32
    %c0_i32_243 = arith.constant 0 : i32
    %249 = tpu.memref_slice %arg4[%c22_i32_242, %c0_i32_243] : memref<32x128xf32, #tpu.memory_space<vmem>> -> memref<1x128xf32, #tpu.memory_space<vmem>>
    %250 = tpu.memref_slice %arg5[%c22_i32_240] : memref<32x!tpu.dma_semaphore, #tpu.memory_space<semaphore_mem>> -> memref<1x!tpu.dma_semaphore, #tpu.memory_space<semaphore_mem>>
    %251 = tpu.memref_squeeze %250 : memref<1x!tpu.dma_semaphore, #tpu.memory_space<semaphore_mem>> -> memref<!tpu.dma_semaphore, #tpu.memory_space<semaphore_mem>>
    tpu.wait_dma2 semaphore(%251 : memref<!tpu.dma_semaphore, #tpu.memory_space<semaphore_mem>>) src(%248 : memref<1x128xf32, #tpu.memory_space<any>>) dst(%249 : memref<1x128xf32, #tpu.memory_space<vmem>>)
    %c23_i32_244 = arith.constant 23 : i32
    %c0_i32_245 = arith.constant 0 : i32
    %252 = tpu.memref_slice %arg2[%23, %c0_i32_245] : memref<2000x128xf32, #tpu.memory_space<any>> -> memref<1x128xf32, #tpu.memory_space<any>>
    %c23_i32_246 = arith.constant 23 : i32
    %c0_i32_247 = arith.constant 0 : i32
    %253 = tpu.memref_slice %arg4[%c23_i32_246, %c0_i32_247] : memref<32x128xf32, #tpu.memory_space<vmem>> -> memref<1x128xf32, #tpu.memory_space<vmem>>
    %254 = tpu.memref_slice %arg5[%c23_i32_244] : memref<32x!tpu.dma_semaphore, #tpu.memory_space<semaphore_mem>> -> memref<1x!tpu.dma_semaphore, #tpu.memory_space<semaphore_mem>>
    %255 = tpu.memref_squeeze %254 : memref<1x!tpu.dma_semaphore, #tpu.memory_space<semaphore_mem>> -> memref<!tpu.dma_semaphore, #tpu.memory_space<semaphore_mem>>
    tpu.wait_dma2 semaphore(%255 : memref<!tpu.dma_semaphore, #tpu.memory_space<semaphore_mem>>) src(%252 : memref<1x128xf32, #tpu.memory_space<any>>) dst(%253 : memref<1x128xf32, #tpu.memory_space<vmem>>)
    %c24_i32_248 = arith.constant 24 : i32
    %c0_i32_249 = arith.constant 0 : i32
    %256 = tpu.memref_slice %arg2[%24, %c0_i32_249] : memref<2000x128xf32, #tpu.memory_space<any>> -> memref<1x128xf32, #tpu.memory_space<any>>
    %c24_i32_250 = arith.constant 24 : i32
    %c0_i32_251 = arith.constant 0 : i32
    %257 = tpu.memref_slice %arg4[%c24_i32_250, %c0_i32_251] : memref<32x128xf32, #tpu.memory_space<vmem>> -> memref<1x128xf32, #tpu.memory_space<vmem>>
    %258 = tpu.memref_slice %arg5[%c24_i32_248] : memref<32x!tpu.dma_semaphore, #tpu.memory_space<semaphore_mem>> -> memref<1x!tpu.dma_semaphore, #tpu.memory_space<semaphore_mem>>
    %259 = tpu.memref_squeeze %258 : memref<1x!tpu.dma_semaphore, #tpu.memory_space<semaphore_mem>> -> memref<!tpu.dma_semaphore, #tpu.memory_space<semaphore_mem>>
    tpu.wait_dma2 semaphore(%259 : memref<!tpu.dma_semaphore, #tpu.memory_space<semaphore_mem>>) src(%256 : memref<1x128xf32, #tpu.memory_space<any>>) dst(%257 : memref<1x128xf32, #tpu.memory_space<vmem>>)
    %c25_i32_252 = arith.constant 25 : i32
    %c0_i32_253 = arith.constant 0 : i32
    %260 = tpu.memref_slice %arg2[%25, %c0_i32_253] : memref<2000x128xf32, #tpu.memory_space<any>> -> memref<1x128xf32, #tpu.memory_space<any>>
    %c25_i32_254 = arith.constant 25 : i32
    %c0_i32_255 = arith.constant 0 : i32
    %261 = tpu.memref_slice %arg4[%c25_i32_254, %c0_i32_255] : memref<32x128xf32, #tpu.memory_space<vmem>> -> memref<1x128xf32, #tpu.memory_space<vmem>>
    %262 = tpu.memref_slice %arg5[%c25_i32_252] : memref<32x!tpu.dma_semaphore, #tpu.memory_space<semaphore_mem>> -> memref<1x!tpu.dma_semaphore, #tpu.memory_space<semaphore_mem>>
    %263 = tpu.memref_squeeze %262 : memref<1x!tpu.dma_semaphore, #tpu.memory_space<semaphore_mem>> -> memref<!tpu.dma_semaphore, #tpu.memory_space<semaphore_mem>>
    tpu.wait_dma2 semaphore(%263 : memref<!tpu.dma_semaphore, #tpu.memory_space<semaphore_mem>>) src(%260 : memref<1x128xf32, #tpu.memory_space<any>>) dst(%261 : memref<1x128xf32, #tpu.memory_space<vmem>>)
    %c26_i32_256 = arith.constant 26 : i32
    %c0_i32_257 = arith.constant 0 : i32
    %264 = tpu.memref_slice %arg2[%26, %c0_i32_257] : memref<2000x128xf32, #tpu.memory_space<any>> -> memref<1x128xf32, #tpu.memory_space<any>>
    %c26_i32_258 = arith.constant 26 : i32
    %c0_i32_259 = arith.constant 0 : i32
    %265 = tpu.memref_slice %arg4[%c26_i32_258, %c0_i32_259] : memref<32x128xf32, #tpu.memory_space<vmem>> -> memref<1x128xf32, #tpu.memory_space<vmem>>
    %266 = tpu.memref_slice %arg5[%c26_i32_256] : memref<32x!tpu.dma_semaphore, #tpu.memory_space<semaphore_mem>> -> memref<1x!tpu.dma_semaphore, #tpu.memory_space<semaphore_mem>>
    %267 = tpu.memref_squeeze %266 : memref<1x!tpu.dma_semaphore, #tpu.memory_space<semaphore_mem>> -> memref<!tpu.dma_semaphore, #tpu.memory_space<semaphore_mem>>
    tpu.wait_dma2 semaphore(%267 : memref<!tpu.dma_semaphore, #tpu.memory_space<semaphore_mem>>) src(%264 : memref<1x128xf32, #tpu.memory_space<any>>) dst(%265 : memref<1x128xf32, #tpu.memory_space<vmem>>)
    %c27_i32_260 = arith.constant 27 : i32
    %c0_i32_261 = arith.constant 0 : i32
    %268 = tpu.memref_slice %arg2[%27, %c0_i32_261] : memref<2000x128xf32, #tpu.memory_space<any>> -> memref<1x128xf32, #tpu.memory_space<any>>
    %c27_i32_262 = arith.constant 27 : i32
    %c0_i32_263 = arith.constant 0 : i32
    %269 = tpu.memref_slice %arg4[%c27_i32_262, %c0_i32_263] : memref<32x128xf32, #tpu.memory_space<vmem>> -> memref<1x128xf32, #tpu.memory_space<vmem>>
    %270 = tpu.memref_slice %arg5[%c27_i32_260] : memref<32x!tpu.dma_semaphore, #tpu.memory_space<semaphore_mem>> -> memref<1x!tpu.dma_semaphore, #tpu.memory_space<semaphore_mem>>
    %271 = tpu.memref_squeeze %270 : memref<1x!tpu.dma_semaphore, #tpu.memory_space<semaphore_mem>> -> memref<!tpu.dma_semaphore, #tpu.memory_space<semaphore_mem>>
    tpu.wait_dma2 semaphore(%271 : memref<!tpu.dma_semaphore, #tpu.memory_space<semaphore_mem>>) src(%268 : memref<1x128xf32, #tpu.memory_space<any>>) dst(%269 : memref<1x128xf32, #tpu.memory_space<vmem>>)
    %c28_i32_264 = arith.constant 28 : i32
    %c0_i32_265 = arith.constant 0 : i32
    %272 = tpu.memref_slice %arg2[%28, %c0_i32_265] : memref<2000x128xf32, #tpu.memory_space<any>> -> memref<1x128xf32, #tpu.memory_space<any>>
    %c28_i32_266 = arith.constant 28 : i32
    %c0_i32_267 = arith.constant 0 : i32
    %273 = tpu.memref_slice %arg4[%c28_i32_266, %c0_i32_267] : memref<32x128xf32, #tpu.memory_space<vmem>> -> memref<1x128xf32, #tpu.memory_space<vmem>>
    %274 = tpu.memref_slice %arg5[%c28_i32_264] : memref<32x!tpu.dma_semaphore, #tpu.memory_space<semaphore_mem>> -> memref<1x!tpu.dma_semaphore, #tpu.memory_space<semaphore_mem>>
    %275 = tpu.memref_squeeze %274 : memref<1x!tpu.dma_semaphore, #tpu.memory_space<semaphore_mem>> -> memref<!tpu.dma_semaphore, #tpu.memory_space<semaphore_mem>>
    tpu.wait_dma2 semaphore(%275 : memref<!tpu.dma_semaphore, #tpu.memory_space<semaphore_mem>>) src(%272 : memref<1x128xf32, #tpu.memory_space<any>>) dst(%273 : memref<1x128xf32, #tpu.memory_space<vmem>>)
    %c29_i32_268 = arith.constant 29 : i32
    %c0_i32_269 = arith.constant 0 : i32
    %276 = tpu.memref_slice %arg2[%29, %c0_i32_269] : memref<2000x128xf32, #tpu.memory_space<any>> -> memref<1x128xf32, #tpu.memory_space<any>>
    %c29_i32_270 = arith.constant 29 : i32
    %c0_i32_271 = arith.constant 0 : i32
    %277 = tpu.memref_slice %arg4[%c29_i32_270, %c0_i32_271] : memref<32x128xf32, #tpu.memory_space<vmem>> -> memref<1x128xf32, #tpu.memory_space<vmem>>
    %278 = tpu.memref_slice %arg5[%c29_i32_268] : memref<32x!tpu.dma_semaphore, #tpu.memory_space<semaphore_mem>> -> memref<1x!tpu.dma_semaphore, #tpu.memory_space<semaphore_mem>>
    %279 = tpu.memref_squeeze %278 : memref<1x!tpu.dma_semaphore, #tpu.memory_space<semaphore_mem>> -> memref<!tpu.dma_semaphore, #tpu.memory_space<semaphore_mem>>
    tpu.wait_dma2 semaphore(%279 : memref<!tpu.dma_semaphore, #tpu.memory_space<semaphore_mem>>) src(%276 : memref<1x128xf32, #tpu.memory_space<any>>) dst(%277 : memref<1x128xf32, #tpu.memory_space<vmem>>)
    %c30_i32_272 = arith.constant 30 : i32
    %c0_i32_273 = arith.constant 0 : i32
    %280 = tpu.memref_slice %arg2[%30, %c0_i32_273] : memref<2000x128xf32, #tpu.memory_space<any>> -> memref<1x128xf32, #tpu.memory_space<any>>
    %c30_i32_274 = arith.constant 30 : i32
    %c0_i32_275 = arith.constant 0 : i32
    %281 = tpu.memref_slice %arg4[%c30_i32_274, %c0_i32_275] : memref<32x128xf32, #tpu.memory_space<vmem>> -> memref<1x128xf32, #tpu.memory_space<vmem>>
    %282 = tpu.memref_slice %arg5[%c30_i32_272] : memref<32x!tpu.dma_semaphore, #tpu.memory_space<semaphore_mem>> -> memref<1x!tpu.dma_semaphore, #tpu.memory_space<semaphore_mem>>
    %283 = tpu.memref_squeeze %282 : memref<1x!tpu.dma_semaphore, #tpu.memory_space<semaphore_mem>> -> memref<!tpu.dma_semaphore, #tpu.memory_space<semaphore_mem>>
    tpu.wait_dma2 semaphore(%283 : memref<!tpu.dma_semaphore, #tpu.memory_space<semaphore_mem>>) src(%280 : memref<1x128xf32, #tpu.memory_space<any>>) dst(%281 : memref<1x128xf32, #tpu.memory_space<vmem>>)
    %c31_i32_276 = arith.constant 31 : i32
    %c0_i32_277 = arith.constant 0 : i32
    %284 = tpu.memref_slice %arg2[%31, %c0_i32_277] : memref<2000x128xf32, #tpu.memory_space<any>> -> memref<1x128xf32, #tpu.memory_space<any>>
    %c31_i32_278 = arith.constant 31 : i32
    %c0_i32_279 = arith.constant 0 : i32
    %285 = tpu.memref_slice %arg4[%c31_i32_278, %c0_i32_279] : memref<32x128xf32, #tpu.memory_space<vmem>> -> memref<1x128xf32, #tpu.memory_space<vmem>>
    %286 = tpu.memref_slice %arg5[%c31_i32_276] : memref<32x!tpu.dma_semaphore, #tpu.memory_space<semaphore_mem>> -> memref<1x!tpu.dma_semaphore, #tpu.memory_space<semaphore_mem>>
    %287 = tpu.memref_squeeze %286 : memref<1x!tpu.dma_semaphore, #tpu.memory_space<semaphore_mem>> -> memref<!tpu.dma_semaphore, #tpu.memory_space<semaphore_mem>>
    tpu.wait_dma2 semaphore(%287 : memref<!tpu.dma_semaphore, #tpu.memory_space<semaphore_mem>>) src(%284 : memref<1x128xf32, #tpu.memory_space<any>>) dst(%285 : memref<1x128xf32, #tpu.memory_space<vmem>>)
    %c0_280 = arith.constant 0 : index
    %c0_281 = arith.constant 0 : index
    %288 = vector.load %arg4[%c0_280, %c0_281] : memref<32x128xf32, #tpu.memory_space<vmem>>, vector<32x128xf32>
    %289 = arith.mulf %288, %288 : vector<32x128xf32>
    %cst = arith.constant dense<0.000000e+00> : vector<32xf32>
    %290 = vector.multi_reduction <add>, %289, %cst [1] : vector<32x128xf32> to vector<32xf32>
    %291 = vector.shape_cast %290 : vector<32xf32> to vector<32x1xf32>
    %292 = math.sqrt %291 : vector<32x1xf32>
    %cst_282 = arith.constant 1.000000e+00 : f32
    %293 = vector.broadcast %cst_282 : f32 to vector<32x1xf32>
    %294 = arith.cmpf ogt, %292, %293 : vector<32x1xf32>
    %cst_283 = arith.constant 1.000000e-07 : f32
    %295 = vector.broadcast %cst_283 : f32 to vector<32x1xf32>
    %296 = arith.addf %292, %295 : vector<32x1xf32>
    %cst_284 = arith.constant 1.000000e+00 : f32
    %297 = vector.broadcast %cst_284 : f32 to vector<32x1xf32>
    %298 = arith.divf %297, %296 : vector<32x1xf32>
    %cst_285 = arith.constant 1.000000e+00 : f32
    %299 = vector.broadcast %cst_285 : f32 to vector<32x1xf32>
    %300 = arith.select %294, %298, %299 : vector<32x1xi1>, vector<32x1xf32>
    %301 = vector.broadcast %300 : vector<32x1xf32> to vector<32x128xf32>
    %302 = arith.mulf %288, %301 : vector<32x128xf32>
    %303 = vector.extract_strided_slice %302 {offsets = [0, 0], sizes = [8, 128], strides = [1, 1]} : vector<32x128xf32> to vector<8x128xf32>
    %304 = vector.extract_strided_slice %302 {offsets = [8, 0], sizes = [8, 128], strides = [1, 1]} : vector<32x128xf32> to vector<8x128xf32>
    %305 = arith.addf %303, %304 : vector<8x128xf32>
    %306 = vector.extract_strided_slice %302 {offsets = [16, 0], sizes = [8, 128], strides = [1, 1]} : vector<32x128xf32> to vector<8x128xf32>
    %307 = arith.addf %305, %306 : vector<8x128xf32>
    %308 = vector.extract_strided_slice %302 {offsets = [24, 0], sizes = [8, 128], strides = [1, 1]} : vector<32x128xf32> to vector<8x128xf32>
    %309 = arith.addf %307, %308 : vector<8x128xf32>
    %cst_286 = arith.constant 2.500000e-01 : f32
    %310 = vector.broadcast %cst_286 : f32 to vector<8x128xf32>
    %311 = arith.mulf %309, %310 : vector<8x128xf32>
    %c0_287 = arith.constant 0 : index
    %c0_288 = arith.constant 0 : index
    %312 = vector.load %arg3[%c0_287, %c0_288] : memref<8x128xf32, #tpu.memory_space<vmem>>, vector<8x128xf32>
    tpu.vector_store %arg3[%c0_287, %c0_288], %311 {strides = array<i32>} : memref<8x128xf32, #tpu.memory_space<vmem>>, vector<8x128xf32>,
    return
  }
  func.func @transform_1(%arg0: i32, %arg1: memref<8x4xi32, #tpu.memory_space<smem>>) -> (i32, i32) {
    %c0_i32 = arith.constant 0 : i32
    %c0_i32_0 = arith.constant 0 : i32
    %c0_i32_1 = arith.constant 0 : i32
    return %c0_i32, %c0_i32_0 : i32, i32
  }
}

</mosaic_0001>

<llo_original>
// kernel: tpu_custom_call.1
$region0: #{tpu_custom_call.1}
  #allocation0 [shape = 'u32[]', space=smem, size = 0x4, offset = 0x4, fixed_abs, tag = 'smem constant byte address 0x4 - core index']
  #allocation1 [shape = 'u32[144,128]{1,0:T(1,128)}', space=vmem, size = 0x12000, scoped, tag = 'internal scratch']
  #allocation2 [shape = 'f32[32,128]{1,0:T(8,128)}', space=vmem, size = 0x4000, scoped, tag = 'scratch operand']
  #allocation3 [shape = 's32[32]{0}', space=sflag, size = 0x80, scoped, tag = 'scratch operand']
  #allocation4 [shape = 's32[1]{0}', space=sflag, size = 0x4, scoped, tag = 'scoped memory for tpu_custom_call.1']
  #allocation5 [shape = 'u8[4096]{0}', space=smem, size = 0x1000, scoped, tag = 'prefetched SMEM operand 0']
  #allocation8 [shape = 's32[]', space=sflag, size = 0x4, offset = 0, fixed_abs, tag = 'sflag constant byte address 0x0 - dummy sync flag']
  #allocation9 [shape = 's32[]', space=sflag, size = 0x4, offset = 0, fixed_abs, tag = 'sflag constant byte address 0x0 - dummy sync flag']
  #allocation10 [shape = 'u32[]', space=smem, size = 0x4, offset = 0x44, fixed_abs, tag = 'smem constant byte address 0x44 - assertion arg 0']
  #allocation11 [shape = 'u32[]', space=smem, size = 0x4, offset = 0x48, fixed_abs, tag = 'smem constant byte address 0x48 - assertion arg 1']
  #allocation12 [shape = 's32[]', space=sflag, size = 0x4, offset = 0, fixed_abs, tag = 'sflag constant byte address 0x0 - dummy sync flag']
  #allocation13 [shape = 's32[]', space=sflag, size = 0x4, offset = 0, fixed_abs, tag = 'sflag constant byte address 0x0 - dummy sync flag']
  #allocation14 [shape = 's32[]', space=sflag, size = 0x4, offset = 0, fixed_abs, tag = 'sflag constant byte address 0x0 - dummy sync flag']
  #allocation15 [shape = 's32[]', space=sflag, size = 0x4, offset = 0, fixed_abs, tag = 'sflag constant byte address 0x0 - dummy sync flag']
  #allocation16 [shape = 's32[]', space=sflag, size = 0x4, offset = 0, fixed_abs, tag = 'sflag constant byte address 0x0 - dummy sync flag']
  #allocation17 [shape = 's32[]', space=sflag, size = 0x4, offset = 0, fixed_abs, tag = 'sflag constant byte address 0x0 - dummy sync flag']
  #allocation18 [shape = 's32[]', space=sflag, size = 0x4, offset = 0, fixed_abs, tag = 'sflag constant byte address 0x0 - dummy sync flag']
  #allocation19 [shape = 's32[]', space=sflag, size = 0x4, offset = 0, fixed_abs, tag = 'sflag constant byte address 0x0 - dummy sync flag']
  #allocation20 [shape = 's32[]', space=sflag, size = 0x4, offset = 0, fixed_abs, tag = 'sflag constant byte address 0x0 - dummy sync flag']
  #allocation21 [shape = 's32[]', space=sflag, size = 0x4, offset = 0, fixed_abs, tag = 'sflag constant byte address 0x0 - dummy sync flag']
  #allocation22 [shape = 's32[]', space=sflag, size = 0x4, offset = 0, fixed_abs, tag = 'sflag constant byte address 0x0 - dummy sync flag']
  #allocation23 [shape = 's32[]', space=sflag, size = 0x4, offset = 0, fixed_abs, tag = 'sflag constant byte address 0x0 - dummy sync flag']
  #allocation24 [shape = 's32[]', space=sflag, size = 0x4, offset = 0, fixed_abs, tag = 'sflag constant byte address 0x0 - dummy sync flag']
  #allocation25 [shape = 's32[]', space=sflag, size = 0x4, offset = 0, fixed_abs, tag = 'sflag constant byte address 0x0 - dummy sync flag']
  #allocation26 [shape = 's32[]', space=sflag, size = 0x4, offset = 0, fixed_abs, tag = 'sflag constant byte address 0x0 - dummy sync flag']
  #allocation27 [shape = 's32[]', space=sflag, size = 0x4, offset = 0, fixed_abs, tag = 'sflag constant byte address 0x0 - dummy sync flag']
  #allocation28 [shape = 's32[]', space=sflag, size = 0x4, offset = 0, fixed_abs, tag = 'sflag constant byte address 0x0 - dummy sync flag']
  #allocation29 [shape = 's32[]', space=sflag, size = 0x4, offset = 0, fixed_abs, tag = 'sflag constant byte address 0x0 - dummy sync flag']
  #allocation30 [shape = 's32[]', space=sflag, size = 0x4, offset = 0, fixed_abs, tag = 'sflag constant byte address 0x0 - dummy sync flag']
  #allocation31 [shape = 's32[]', space=sflag, size = 0x4, offset = 0, fixed_abs, tag = 'sflag constant byte address 0x0 - dummy sync flag']
  #allocation32 [shape = 's32[]', space=sflag, size = 0x4, offset = 0, fixed_abs, tag = 'sflag constant byte address 0x0 - dummy sync flag']
  #allocation33 [shape = 's32[]', space=sflag, size = 0x4, offset = 0, fixed_abs, tag = 'sflag constant byte address 0x0 - dummy sync flag']
  #allocation34 [shape = 's32[]', space=sflag, size = 0x4, offset = 0, fixed_abs, tag = 'sflag constant byte address 0x0 - dummy sync flag']
  #allocation35 [shape = 's32[]', space=sflag, size = 0x4, offset = 0, fixed_abs, tag = 'sflag constant byte address 0x0 - dummy sync flag']
  #allocation36 [shape = 's32[]', space=sflag, size = 0x4, offset = 0, fixed_abs, tag = 'sflag constant byte address 0x0 - dummy sync flag']
  #allocation37 [shape = 's32[]', space=sflag, size = 0x4, offset = 0, fixed_abs, tag = 'sflag constant byte address 0x0 - dummy sync flag']
  #allocation38 [shape = 's32[]', space=sflag, size = 0x4, offset = 0, fixed_abs, tag = 'sflag constant byte address 0x0 - dummy sync flag']
  #allocation39 [shape = 's32[]', space=sflag, size = 0x4, offset = 0, fixed_abs, tag = 'sflag constant byte address 0x0 - dummy sync flag']
  #allocation40 [shape = 's32[]', space=sflag, size = 0x4, offset = 0, fixed_abs, tag = 'sflag constant byte address 0x0 - dummy sync flag']
  #allocation41 [shape = 's32[]', space=sflag, size = 0x4, offset = 0, fixed_abs, tag = 'sflag constant byte address 0x0 - dummy sync flag']
  #allocation42 [shape = 's32[]', space=sflag, size = 0x4, offset = 0, fixed_abs, tag = 'sflag constant byte address 0x0 - dummy sync flag']
  #allocation43 [shape = 's32[]', space=sflag, size = 0x4, offset = 0, fixed_abs, tag = 'sflag constant byte address 0x0 - dummy sync flag']
  #allocation44 [shape = 's32[]', space=sflag, size = 0x4, offset = 0, fixed_abs, tag = 'sflag constant byte address 0x0 - dummy sync flag']
  #allocation45 [shape = 's32[]', space=sflag, size = 0x4, offset = 0, fixed_abs, tag = 'sflag constant byte address 0x0 - dummy sync flag']
  #allocation46 [shape = 's32[]', space=sflag, size = 0x4, offset = 0, fixed_abs, tag = 'sflag constant byte address 0x0 - dummy sync flag']
  #allocation47 [shape = 's32[]', space=sflag, size = 0x4, offset = 0, fixed_abs, tag = 'sflag constant byte address 0x0 - dummy sync flag']
  #allocation48 [shape = 's32[]', space=sflag, size = 0x4, offset = 0, fixed_abs, tag = 'sflag constant byte address 0x0 - dummy sync flag']
  #allocation49 [shape = 's32[]', space=sflag, size = 0x4, offset = 0, fixed_abs, tag = 'sflag constant byte address 0x0 - dummy sync flag']
  #allocation50 [shape = 's32[]', space=sflag, size = 0x4, offset = 0, fixed_abs, tag = 'sflag constant byte address 0x0 - dummy sync flag']
  #allocation51 [shape = 's32[]', space=sflag, size = 0x4, offset = 0, fixed_abs, tag = 'sflag constant byte address 0x0 - dummy sync flag']
  #allocation52 [shape = 's32[]', space=sflag, size = 0x4, offset = 0, fixed_abs, tag = 'sflag constant byte address 0x0 - dummy sync flag']
  #allocation53 [shape = 's32[]', space=sflag, size = 0x4, offset = 0, fixed_abs, tag = 'sflag constant byte address 0x0 - dummy sync flag']
  #allocation54 [shape = 's32[]', space=sflag, size = 0x4, offset = 0, fixed_abs, tag = 'sflag constant byte address 0x0 - dummy sync flag']
  #allocation55 [shape = 's32[]', space=sflag, size = 0x4, offset = 0, fixed_abs, tag = 'sflag constant byte address 0x0 - dummy sync flag']
  #allocation56 [shape = 's32[]', space=sflag, size = 0x4, offset = 0, fixed_abs, tag = 'sflag constant byte address 0x0 - dummy sync flag']
  #allocation57 [shape = 's32[]', space=sflag, size = 0x4, offset = 0, fixed_abs, tag = 'sflag constant byte address 0x0 - dummy sync flag']
  #allocation58 [shape = 's32[]', space=sflag, size = 0x4, offset = 0, fixed_abs, tag = 'sflag constant byte address 0x0 - dummy sync flag']
  #allocation59 [shape = 's32[]', space=sflag, size = 0x4, offset = 0, fixed_abs, tag = 'sflag constant byte address 0x0 - dummy sync flag']
  #allocation60 [shape = 's32[]', space=sflag, size = 0x4, offset = 0, fixed_abs, tag = 'sflag constant byte address 0x0 - dummy sync flag']
  #allocation61 [shape = 's32[]', space=sflag, size = 0x4, offset = 0, fixed_abs, tag = 'sflag constant byte address 0x0 - dummy sync flag']
  #allocation62 [shape = 's32[]', space=sflag, size = 0x4, offset = 0, fixed_abs, tag = 'sflag constant byte address 0x0 - dummy sync flag']
  #allocation63 [shape = 's32[]', space=sflag, size = 0x4, offset = 0, fixed_abs, tag = 'sflag constant byte address 0x0 - dummy sync flag']
  #allocation64 [shape = 's32[]', space=sflag, size = 0x4, offset = 0, fixed_abs, tag = 'sflag constant byte address 0x0 - dummy sync flag']
  #allocation65 [shape = 's32[]', space=sflag, size = 0x4, offset = 0, fixed_abs, tag = 'sflag constant byte address 0x0 - dummy sync flag']
  #allocation66 [shape = 's32[]', space=sflag, size = 0x4, offset = 0, fixed_abs, tag = 'sflag constant byte address 0x0 - dummy sync flag']
  #allocation67 [shape = 's32[]', space=sflag, size = 0x4, offset = 0, fixed_abs, tag = 'sflag constant byte address 0x0 - dummy sync flag']
  #allocation68 [shape = 's32[]', space=sflag, size = 0x4, offset = 0, fixed_abs, tag = 'sflag constant byte address 0x0 - dummy sync flag']
  #allocation69 [shape = 's32[]', space=sflag, size = 0x4, offset = 0, fixed_abs, tag = 'sflag constant byte address 0x0 - dummy sync flag']
  #allocation70 [shape = 's32[]', space=sflag, size = 0x4, offset = 0, fixed_abs, tag = 'sflag constant byte address 0x0 - dummy sync flag']
  #allocation71 [shape = 's32[]', space=sflag, size = 0x4, offset = 0, fixed_abs, tag = 'sflag constant byte address 0x0 - dummy sync flag']
  #allocation72 [shape = 's32[]', space=sflag, size = 0x4, offset = 0, fixed_abs, tag = 'sflag constant byte address 0x0 - dummy sync flag']
  #allocation73 [shape = 's32[]', space=sflag, size = 0x4, offset = 0, fixed_abs, tag = 'sflag constant byte address 0x0 - dummy sync flag']
  %s0 = inlined_call_operand.vmem [shape: s32[8,4], index: 0, kind: input, shape index: {}]
  %s1 = inlined_call_operand.hbm [shape: f32[2000,128], index: 1, kind: input, shape index: {}]
  %s2 = inlined_call_operand.hbm [shape: f32[8,128], index: 2, kind: output, shape index: {}]
  %s3 = sld [smem:[#allocation0]]
  $region138: #{tpu_custom_call.1} parent=0
    _
  %s5 = ssub.s32 1, %s3
  %s6 = scalar_select 0, %s5, %s3
  %s7 = sshll.u32 %s0, 4
  %s8 = int_to_ptr.vmem [resolvable:$true] %s7
  %10 = dma.vmem_to_smem %s8, 128, [#allocation5], [#allocation4]
  %11 = dma.done [#allocation4], 128
  %12 = sfence
  $region1: #{tpu_custom_call.1} parent=0
    #allocation6 [shape = 'u8[4096]{0}', space=vmem, size = 0x1000, scoped, tag = 'output window, operand 0, single buffered']
    #allocation7 [shape = 's32[1]{0}', space=sflag, size = 0x4, scoped, tag = 'scoped memory for tpu_custom_call.1']
    %13 = vsyncpa [#allocation7], 0
    %s14 = sld [smem:[#allocation5]]
    %s15 = sld [smem:[#allocation5 + $0x80]]
    %s16 = sld [smem:[#allocation5 + $0x100]]
    %s17 = sld [smem:[#allocation5 + $0x180]]
    %s18 = sld [smem:[#allocation5 + $0x200]]
    %s19 = sld [smem:[#allocation5 + $0x280]]
    %s20 = sld [smem:[#allocation5 + $0x300]]
    %s21 = sld [smem:[#allocation5 + $0x380]]
    %s22 = sld [smem:[#allocation5 + $0x1]]
    %s23 = sld [smem:[#allocation5 + $0x81]]
    %s24 = sld [smem:[#allocation5 + $0x101]]
    %s25 = sld [smem:[#allocation5 + $0x181]]
    %s26 = sld [smem:[#allocation5 + $0x201]]
    %s27 = sld [smem:[#allocation5 + $0x281]]
    %s28 = sld [smem:[#allocation5 + $0x301]]
    %s29 = sld [smem:[#allocation5 + $0x381]]
    %s30 = sld [smem:[#allocation5 + $0x2]]
    %s31 = sld [smem:[#allocation5 + $0x82]]
    %s32 = sld [smem:[#allocation5 + $0x102]]
    %s33 = sld [smem:[#allocation5 + $0x182]]
    %s34 = sld [smem:[#allocation5 + $0x202]]
    %s35 = sld [smem:[#allocation5 + $0x282]]
    %s36 = sld [smem:[#allocation5 + $0x302]]
    %s37 = sld [smem:[#allocation5 + $0x382]]
    %s38 = sld [smem:[#allocation5 + $0x3]]
    %s39 = sld [smem:[#allocation5 + $0x83]]
    %s40 = sld [smem:[#allocation5 + $0x103]]
    %s41 = sld [smem:[#allocation5 + $0x183]]
    %s42 = sld [smem:[#allocation5 + $0x203]]
    %s43 = sld [smem:[#allocation5 + $0x283]]
    %s44 = sld [smem:[#allocation5 + $0x303]]
    %s45 = sld [smem:[#allocation5 + $0x383]]
    %s46 = smul.addr %s14, 16
    %s47 = scalar_lea.hbm %s1, %s46
    // Predicated region
    $region2: #{tpu_custom_call.1} parent=1 // pred_check
      _
    $region3: #{tpu_custom_call.1} parent=1 // pred_check_branch
      %49 = sbr.rel target = $region5
    $region4: #{tpu_custom_call.1} parent=1 // pred_region
      %50 = sst [smem:[#allocation10]] [#allocation9]
      %51 = sst [smem:[#allocation11]] [#allocation8]
    $region5: #{tpu_custom_call.1} parent=1 // pred_fallthru
      _
    %53 = shalt.err (0)
    %s55 = sshll.u32 [#allocation2], 4
    %s56 = int_to_ptr.vmem [resolvable:$true] %s55
    %58 = dma.hbm_to_vmem [thread:$0]  %s47, 16, %s56, [#allocation3]
    %s59 = smul.addr %s15, 16
    %s60 = scalar_lea.hbm %s1, %s59
    %s61 = scalar_lea.vmem [#allocation2], 1
    %s62 = scalar_lea.sflag [#allocation3], 1
    // Predicated region
    $region6: #{tpu_custom_call.1} parent=1 // pred_check
      _
    $region7: #{tpu_custom_call.1} parent=1 // pred_check_branch
      %64 = sbr.rel target = $region9
    $region8: #{tpu_custom_call.1} parent=1 // pred_region
      %65 = sst [smem:[#allocation10]] [#allocation13]
      %66 = sst [smem:[#allocation11]] [#allocation12]
    $region9: #{tpu_custom_call.1} parent=1 // pred_fallthru
      _
    %68 = shalt.err (0)
    %s70 = sshll.u32 %s61, 4
    %s71 = int_to_ptr.vmem [resolvable:$true] %s70
    %73 = dma.hbm_to_vmem [thread:$0]  %s60, 16, %s71, %s62
    %s74 = smul.addr %s16, 16
    %s75 = scalar_lea.hbm %s1, %s74
    %s76 = scalar_lea.vmem [#allocation2], 2
    %s77 = scalar_lea.sflag [#allocation3], 2
    // Predicated region
    $region10: #{tpu_custom_call.1} parent=1 // pred_check
      _
    $region11: #{tpu_custom_call.1} parent=1 // pred_check_branch
      %79 = sbr.rel target = $region13
    $region12: #{tpu_custom_call.1} parent=1 // pred_region
      %80 = sst [smem:[#allocation10]] [#allocation15]
      %81 = sst [smem:[#allocation11]] [#allocation14]
    $region13: #{tpu_custom_call.1} parent=1 // pred_fallthru
      _
    %83 = shalt.err (0)
    %s85 = sshll.u32 %s76, 4
    %s86 = int_to_ptr.vmem [resolvable:$true] %s85
    %88 = dma.hbm_to_vmem [thread:$0]  %s75, 16, %s86, %s77
    %s89 = smul.addr %s17, 16
    %s90 = scalar_lea.hbm %s1, %s89
    %s91 = scalar_lea.vmem [#allocation2], 3
    %s92 = scalar_lea.sflag [#allocation3], 3
    // Predicated region
    $region14: #{tpu_custom_call.1} parent=1 // pred_check
      _
    $region15: #{tpu_custom_call.1} parent=1 // pred_check_branch
      %94 = sbr.rel target = $region17
    $region16: #{tpu_custom_call.1} parent=1 // pred_region
      %95 = sst [smem:[#allocation10]] [#allocation17]
      %96 = sst [smem:[#allocation11]] [#allocation16]
    $region17: #{tpu_custom_call.1} parent=1 // pred_fallthru
      _
    %98 = shalt.err (0)
    %s100 = sshll.u32 %s91, 4
    %s101 = int_to_ptr.vmem [resolvable:$true] %s100
    %103 = dma.hbm_to_vmem [thread:$0]  %s90, 16, %s101, %s92
    %s104 = smul.addr %s18, 16
    %s105 = scalar_lea.hbm %s1, %s104
    %s106 = scalar_lea.vmem [#allocation2], 4
    %s107 = scalar_lea.sflag [#allocation3], 4
    // Predicated region
    $region18: #{tpu_custom_call.1} parent=1 // pred_check
      _
    $region19: #{tpu_custom_call.1} parent=1 // pred_check_branch
      %109 = sbr.rel target = $region21
    $region20: #{tpu_custom_call.1} parent=1 // pred_region
      %110 = sst [smem:[#allocation10]] [#allocation19]
      %111 = sst [smem:[#allocation11]] [#allocation18]
    $region21: #{tpu_custom_call.1} parent=1 // pred_fallthru
      _
    %113 = shalt.err (0)
    %s115 = sshll.u32 %s106, 4
    %s116 = int_to_ptr.vmem [resolvable:$true] %s115
    %118 = dma.hbm_to_vmem [thread:$0]  %s105, 16, %s116, %s107
    %s119 = smul.addr %s19, 16
    %s120 = scalar_lea.hbm %s1, %s119
    %s121 = scalar_lea.vmem [#allocation2], 5
    %s122 = scalar_lea.sflag [#allocation3], 5
    // Predicated region
    $region22: #{tpu_custom_call.1} parent=1 // pred_check
      _
    $region23: #{tpu_custom_call.1} parent=1 // pred_check_branch
      %124 = sbr.rel target = $region25
    $region24: #{tpu_custom_call.1} parent=1 // pred_region
      %125 = sst [smem:[#allocation10]] [#allocation21]
      %126 = sst [smem:[#allocation11]] [#allocation20]
    $region25: #{tpu_custom_call.1} parent=1 // pred_fallthru
      _
    %128 = shalt.err (0)
    %s130 = sshll.u32 %s121, 4
    %s131 = int_to_ptr.vmem [resolvable:$true] %s130
    %133 = dma.hbm_to_vmem [thread:$0]  %s120, 16, %s131, %s122
    %s134 = smul.addr %s20, 16
    %s135 = scalar_lea.hbm %s1, %s134
    %s136 = scalar_lea.vmem [#allocation2], 6
    %s137 = scalar_lea.sflag [#allocation3], 6
    // Predicated region
    $region26: #{tpu_custom_call.1} parent=1 // pred_check
      _
    $region27: #{tpu_custom_call.1} parent=1 // pred_check_branch
      %139 = sbr.rel target = $region29
    $region28: #{tpu_custom_call.1} parent=1 // pred_region
      %140 = sst [smem:[#allocation10]] [#allocation23]
      %141 = sst [smem:[#allocation11]] [#allocation22]
    $region29: #{tpu_custom_call.1} parent=1 // pred_fallthru
      _
    %143 = shalt.err (0)
    %s145 = sshll.u32 %s136, 4
    %s146 = int_to_ptr.vmem [resolvable:$true] %s145
    %148 = dma.hbm_to_vmem [thread:$0]  %s135, 16, %s146, %s137
    %s149 = smul.addr %s21, 16
    %s150 = scalar_lea.hbm %s1, %s149
    %s151 = scalar_lea.vmem [#allocation2], 7
    %s152 = scalar_lea.sflag [#allocation3], 7
    // Predicated region
    $region30: #{tpu_custom_call.1} parent=1 // pred_check
      _
    $region31: #{tpu_custom_call.1} parent=1 // pred_check_branch
      %154 = sbr.rel target = $region33
    $region32: #{tpu_custom_call.1} parent=1 // pred_region
      %155 = sst [smem:[#allocation10]] [#allocation25]
      %156 = sst [smem:[#allocation11]] [#allocation24]
    $region33: #{tpu_custom_call.1} parent=1 // pred_fallthru
      _
    %158 = shalt.err (0)
    %s160 = sshll.u32 %s151, 4
    %s161 = int_to_ptr.vmem [resolvable:$true] %s160
    %163 = dma.hbm_to_vmem [thread:$0]  %s150, 16, %s161, %s152
    %s164 = smul.addr %s22, 16
    %s165 = scalar_lea.hbm %s1, %s164
    %s166 = scalar_lea.vmem [#allocation2], 8
    %s167 = scalar_lea.sflag [#allocation3], 8
    // Predicated region
    $region34: #{tpu_custom_call.1} parent=1 // pred_check
      _
    $region35: #{tpu_custom_call.1} parent=1 // pred_check_branch
      %169 = sbr.rel target = $region37
    $region36: #{tpu_custom_call.1} parent=1 // pred_region
      %170 = sst [smem:[#allocation10]] [#allocation27]
      %171 = sst [smem:[#allocation11]] [#allocation26]
    $region37: #{tpu_custom_call.1} parent=1 // pred_fallthru
      _
    %173 = shalt.err (0)
    %s175 = sshll.u32 %s166, 4
    %s176 = int_to_ptr.vmem [resolvable:$true] %s175
    %178 = dma.hbm_to_vmem [thread:$0]  %s165, 16, %s176, %s167
    %s179 = smul.addr %s23, 16
    %s180 = scalar_lea.hbm %s1, %s179
    %s181 = scalar_lea.vmem [#allocation2], 9
    %s182 = scalar_lea.sflag [#allocation3], 9
    // Predicated region
    $region38: #{tpu_custom_call.1} parent=1 // pred_check
      _
    $region39: #{tpu_custom_call.1} parent=1 // pred_check_branch
      %184 = sbr.rel target = $region41
    $region40: #{tpu_custom_call.1} parent=1 // pred_region
      %185 = sst [smem:[#allocation10]] [#allocation29]
      %186 = sst [smem:[#allocation11]] [#allocation28]
    $region41: #{tpu_custom_call.1} parent=1 // pred_fallthru
      _
    %188 = shalt.err (0)
    %s190 = sshll.u32 %s181, 4
    %s191 = int_to_ptr.vmem [resolvable:$true] %s190
    %193 = dma.hbm_to_vmem [thread:$0]  %s180, 16, %s191, %s182
    %s194 = smul.addr %s24, 16
    %s195 = scalar_lea.hbm %s1, %s194
    %s196 = scalar_lea.vmem [#allocation2], 10
    %s197 = scalar_lea.sflag [#allocation3], 10
    // Predicated region
    $region42: #{tpu_custom_call.1} parent=1 // pred_check
      _
    $region43: #{tpu_custom_call.1} parent=1 // pred_check_branch
      %199 = sbr.rel target = $region45
    $region44: #{tpu_custom_call.1} parent=1 // pred_region
      %200 = sst [smem:[#allocation10]] [#allocation31]
      %201 = sst [smem:[#allocation11]] [#allocation30]
    $region45: #{tpu_custom_call.1} parent=1 // pred_fallthru
      _
    %203 = shalt.err (0)
    %s205 = sshll.u32 %s196, 4
    %s206 = int_to_ptr.vmem [resolvable:$true] %s205
    %208 = dma.hbm_to_vmem [thread:$0]  %s195, 16, %s206, %s197
    %s209 = smul.addr %s25, 16
    %s210 = scalar_lea.hbm %s1, %s209
    %s211 = scalar_lea.vmem [#allocation2], 11
    %s212 = scalar_lea.sflag [#allocation3], 11
    // Predicated region
    $region46: #{tpu_custom_call.1} parent=1 // pred_check
      _
    $region47: #{tpu_custom_call.1} parent=1 // pred_check_branch
      %214 = sbr.rel target = $region49
    $region48: #{tpu_custom_call.1} parent=1 // pred_region
      %215 = sst [smem:[#allocation10]] [#allocation33]
      %216 = sst [smem:[#allocation11]] [#allocation32]
    $region49: #{tpu_custom_call.1} parent=1 // pred_fallthru
      _
    %218 = shalt.err (0)
    %s220 = sshll.u32 %s211, 4
    %s221 = int_to_ptr.vmem [resolvable:$true] %s220
    %223 = dma.hbm_to_vmem [thread:$0]  %s210, 16, %s221, %s212
    %s224 = smul.addr %s26, 16
    %s225 = scalar_lea.hbm %s1, %s224
    %s226 = scalar_lea.vmem [#allocation2], 12
    %s227 = scalar_lea.sflag [#allocation3], 12
    // Predicated region
    $region50: #{tpu_custom_call.1} parent=1 // pred_check
      _
    $region51: #{tpu_custom_call.1} parent=1 // pred_check_branch
      %229 = sbr.rel target = $region53
    $region52: #{tpu_custom_call.1} parent=1 // pred_region
      %230 = sst [smem:[#allocation10]] [#allocation35]
      %231 = sst [smem:[#allocation11]] [#allocation34]
    $region53: #{tpu_custom_call.1} parent=1 // pred_fallthru
      _
    %233 = shalt.err (0)
    %s235 = sshll.u32 %s226, 4
    %s236 = int_to_ptr.vmem [resolvable:$true] %s235
    %238 = dma.hbm_to_vmem [thread:$0]  %s225, 16, %s236, %s227
    %s239 = smul.addr %s27, 16
    %s240 = scalar_lea.hbm %s1, %s239
    %s241 = scalar_lea.vmem [#allocation2], 13
    %s242 = scalar_lea.sflag [#allocation3], 13
    // Predicated region
    $region54: #{tpu_custom_call.1} parent=1 // pred_check
      _
    $region55: #{tpu_custom_call.1} parent=1 // pred_check_branch
      %244 = sbr.rel target = $region57
    $region56: #{tpu_custom_call.1} parent=1 // pred_region
      %245 = sst [smem:[#allocation10]] [#allocation37]
      %246 = sst [smem:[#allocation11]] [#allocation36]
    $region57: #{tpu_custom_call.1} parent=1 // pred_fallthru
      _
    %248 = shalt.err (0)
    %s250 = sshll.u32 %s241, 4
    %s251 = int_to_ptr.vmem [resolvable:$true] %s250
    %253 = dma.hbm_to_vmem [thread:$0]  %s240, 16, %s251, %s242
    %s254 = smul.addr %s28, 16
    %s255 = scalar_lea.hbm %s1, %s254
    %s256 = scalar_lea.vmem [#allocation2], 14
    %s257 = scalar_lea.sflag [#allocation3], 14
    // Predicated region
    $region58: #{tpu_custom_call.1} parent=1 // pred_check
      _
    $region59: #{tpu_custom_call.1} parent=1 // pred_check_branch
      %259 = sbr.rel target = $region61
    $region60: #{tpu_custom_call.1} parent=1 // pred_region
      %260 = sst [smem:[#allocation10]] [#allocation39]
      %261 = sst [smem:[#allocation11]] [#allocation38]
    $region61: #{tpu_custom_call.1} parent=1 // pred_fallthru
      _
    %263 = shalt.err (0)
    %s265 = sshll.u32 %s256, 4
    %s266 = int_to_ptr.vmem [resolvable:$true] %s265
    %268 = dma.hbm_to_vmem [thread:$0]  %s255, 16, %s266, %s257
    %s269 = smul.addr %s29, 16
    %s270 = scalar_lea.hbm %s1, %s269
    %s271 = scalar_lea.vmem [#allocation2], 15
    %s272 = scalar_lea.sflag [#allocation3], 15
    // Predicated region
    $region62: #{tpu_custom_call.1} parent=1 // pred_check
      _
    $region63: #{tpu_custom_call.1} parent=1 // pred_check_branch
      %274 = sbr.rel target = $region65
    $region64: #{tpu_custom_call.1} parent=1 // pred_region
      %275 = sst [smem:[#allocation10]] [#allocation41]
      %276 = sst [smem:[#allocation11]] [#allocation40]
    $region65: #{tpu_custom_call.1} parent=1 // pred_fallthru
      _
    %278 = shalt.err (0)
    %s280 = sshll.u32 %s271, 4
    %s281 = int_to_ptr.vmem [resolvable:$true] %s280
    %283 = dma.hbm_to_vmem [thread:$0]  %s270, 16, %s281, %s272
    %s284 = smul.addr %s30, 16
    %s285 = scalar_lea.hbm %s1, %s284
    %s286 = scalar_lea.vmem [#allocation2], 16
    %s287 = scalar_lea.sflag [#allocation3], 16
    // Predicated region
    $region66: #{tpu_custom_call.1} parent=1 // pred_check
      _
    $region67: #{tpu_custom_call.1} parent=1 // pred_check_branch
      %289 = sbr.rel target = $region69
    $region68: #{tpu_custom_call.1} parent=1 // pred_region
      %290 = sst [smem:[#allocation10]] [#allocation43]
      %291 = sst [smem:[#allocation11]] [#allocation42]
    $region69: #{tpu_custom_call.1} parent=1 // pred_fallthru
      _
    %293 = shalt.err (0)
    %s295 = sshll.u32 %s286, 4
    %s296 = int_to_ptr.vmem [resolvable:$true] %s295
    %298 = dma.hbm_to_vmem [thread:$0]  %s285, 16, %s296, %s287
    %s299 = smul.addr %s31, 16
    %s300 = scalar_lea.hbm %s1, %s299
    %s301 = scalar_lea.vmem [#allocation2], 17
    %s302 = scalar_lea.sflag [#allocation3], 17
    // Predicated region
    $region70: #{tpu_custom_call.1} parent=1 // pred_check
      _
    $region71: #{tpu_custom_call.1} parent=1 // pred_check_branch
      %304 = sbr.rel target = $region73
    $region72: #{tpu_custom_call.1} parent=1 // pred_region
      %305 = sst [smem:[#allocation10]] [#allocation45]
      %306 = sst [smem:[#allocation11]] [#allocation44]
    $region73: #{tpu_custom_call.1} parent=1 // pred_fallthru
      _
    %308 = shalt.err (0)
    %s310 = sshll.u32 %s301, 4
    %s311 = int_to_ptr.vmem [resolvable:$true] %s310
    %313 = dma.hbm_to_vmem [thread:$0]  %s300, 16, %s311, %s302
    %s314 = smul.addr %s32, 16
    %s315 = scalar_lea.hbm %s1, %s314
    %s316 = scalar_lea.vmem [#allocation2], 18
    %s317 = scalar_lea.sflag [#allocation3], 18
    // Predicated region
    $region74: #{tpu_custom_call.1} parent=1 // pred_check
      _
    $region75: #{tpu_custom_call.1} parent=1 // pred_check_branch
      %319 = sbr.rel target = $region77
    $region76: #{tpu_custom_call.1} parent=1 // pred_region
      %320 = sst [smem:[#allocation10]] [#allocation47]
      %321 = sst [smem:[#allocation11]] [#allocation46]
    $region77: #{tpu_custom_call.1} parent=1 // pred_fallthru
      _
    %323 = shalt.err (0)
    %s325 = sshll.u32 %s316, 4
    %s326 = int_to_ptr.vmem [resolvable:$true] %s325
    %328 = dma.hbm_to_vmem [thread:$0]  %s315, 16, %s326, %s317
    %s329 = smul.addr %s33, 16
    %s330 = scalar_lea.hbm %s1, %s329
    %s331 = scalar_lea.vmem [#allocation2], 19
    %s332 = scalar_lea.sflag [#allocation3], 19
    // Predicated region
    $region78: #{tpu_custom_call.1} parent=1 // pred_check
      _
    $region79: #{tpu_custom_call.1} parent=1 // pred_check_branch
      %334 = sbr.rel target = $region81
    $region80: #{tpu_custom_call.1} parent=1 // pred_region
      %335 = sst [smem:[#allocation10]] [#allocation49]
      %336 = sst [smem:[#allocation11]] [#allocation48]
    $region81: #{tpu_custom_call.1} parent=1 // pred_fallthru
      _
    %338 = shalt.err (0)
    %s340 = sshll.u32 %s331, 4
    %s341 = int_to_ptr.vmem [resolvable:$true] %s340
    %343 = dma.hbm_to_vmem [thread:$0]  %s330, 16, %s341, %s332
    %s344 = smul.addr %s34, 16
    %s345 = scalar_lea.hbm %s1, %s344
    %s346 = scalar_lea.vmem [#allocation2], 20
    %s347 = scalar_lea.sflag [#allocation3], 20
    // Predicated region
    $region82: #{tpu_custom_call.1} parent=1 // pred_check
      _
    $region83: #{tpu_custom_call.1} parent=1 // pred_check_branch
      %349 = sbr.rel target = $region85
    $region84: #{tpu_custom_call.1} parent=1 // pred_region
      %350 = sst [smem:[#allocation10]] [#allocation51]
      %351 = sst [smem:[#allocation11]] [#allocation50]
    $region85: #{tpu_custom_call.1} parent=1 // pred_fallthru
      _
    %353 = shalt.err (0)
    %s355 = sshll.u32 %s346, 4
    %s356 = int_to_ptr.vmem [resolvable:$true] %s355
    %358 = dma.hbm_to_vmem [thread:$0]  %s345, 16, %s356, %s347
    %s359 = smul.addr %s35, 16
    %s360 = scalar_lea.hbm %s1, %s359
    %s361 = scalar_lea.vmem [#allocation2], 21
    %s362 = scalar_lea.sflag [#allocation3], 21
    // Predicated region
    $region86: #{tpu_custom_call.1} parent=1 // pred_check
      _
    $region87: #{tpu_custom_call.1} parent=1 // pred_check_branch
      %364 = sbr.rel target = $region89
    $region88: #{tpu_custom_call.1} parent=1 // pred_region
      %365 = sst [smem:[#allocation10]] [#allocation53]
      %366 = sst [smem:[#allocation11]] [#allocation52]
    $region89: #{tpu_custom_call.1} parent=1 // pred_fallthru
      _
    %368 = shalt.err (0)
    %s370 = sshll.u32 %s361, 4
    %s371 = int_to_ptr.vmem [resolvable:$true] %s370
    %373 = dma.hbm_to_vmem [thread:$0]  %s360, 16, %s371, %s362
    %s374 = smul.addr %s36, 16
    %s375 = scalar_lea.hbm %s1, %s374
    %s376 = scalar_lea.vmem [#allocation2], 22
    %s377 = scalar_lea.sflag [#allocation3], 22
    // Predicated region
    $region90: #{tpu_custom_call.1} parent=1 // pred_check
      _
    $region91: #{tpu_custom_call.1} parent=1 // pred_check_branch
      %379 = sbr.rel target = $region93
    $region92: #{tpu_custom_call.1} parent=1 // pred_region
      %380 = sst [smem:[#allocation10]] [#allocation55]
      %381 = sst [smem:[#allocation11]] [#allocation54]
    $region93: #{tpu_custom_call.1} parent=1 // pred_fallthru
      _
    %383 = shalt.err (0)
    %s385 = sshll.u32 %s376, 4
    %s386 = int_to_ptr.vmem [resolvable:$true] %s385
    %388 = dma.hbm_to_vmem [thread:$0]  %s375, 16, %s386, %s377
    %s389 = smul.addr %s37, 16
    %s390 = scalar_lea.hbm %s1, %s389
    %s391 = scalar_lea.vmem [#allocation2], 23
    %s392 = scalar_lea.sflag [#allocation3], 23
    // Predicated region
    $region94: #{tpu_custom_call.1} parent=1 // pred_check
      _
    $region95: #{tpu_custom_call.1} parent=1 // pred_check_branch
      %394 = sbr.rel target = $region97
    $region96: #{tpu_custom_call.1} parent=1 // pred_region
      %395 = sst [smem:[#allocation10]] [#allocation57]
      %396 = sst [smem:[#allocation11]] [#allocation56]
    $region97: #{tpu_custom_call.1} parent=1 // pred_fallthru
      _
    %398 = shalt.err (0)
    %s400 = sshll.u32 %s391, 4
    %s401 = int_to_ptr.vmem [resolvable:$true] %s400
    %403 = dma.hbm_to_vmem [thread:$0]  %s390, 16, %s401, %s392
    %s404 = smul.addr %s38, 16
    %s405 = scalar_lea.hbm %s1, %s404
    %s406 = scalar_lea.vmem [#allocation2], 24
    %s407 = scalar_lea.sflag [#allocation3], 24
    // Predicated region
    $region98: #{tpu_custom_call.1} parent=1 // pred_check
      _
    $region99: #{tpu_custom_call.1} parent=1 // pred_check_branch
      %409 = sbr.rel target = $region101
    $region100: #{tpu_custom_call.1} parent=1 // pred_region
      %410 = sst [smem:[#allocation10]] [#allocation59]
      %411 = sst [smem:[#allocation11]] [#allocation58]
    $region101: #{tpu_custom_call.1} parent=1 // pred_fallthru
      _
    %413 = shalt.err (0)
    %s415 = sshll.u32 %s406, 4
    %s416 = int_to_ptr.vmem [resolvable:$true] %s415
    %418 = dma.hbm_to_vmem [thread:$0]  %s405, 16, %s416, %s407
    %s419 = smul.addr %s39, 16
    %s420 = scalar_lea.hbm %s1, %s419
    %s421 = scalar_lea.vmem [#allocation2], 25
    %s422 = scalar_lea.sflag [#allocation3], 25
    // Predicated region
    $region102: #{tpu_custom_call.1} parent=1 // pred_check
      _
    $region103: #{tpu_custom_call.1} parent=1 // pred_check_branch
      %424 = sbr.rel target = $region105
    $region104: #{tpu_custom_call.1} parent=1 // pred_region
      %425 = sst [smem:[#allocation10]] [#allocation61]
      %426 = sst [smem:[#allocation11]] [#allocation60]
    $region105: #{tpu_custom_call.1} parent=1 // pred_fallthru
      _
    %428 = shalt.err (0)
    %s430 = sshll.u32 %s421, 4
    %s431 = int_to_ptr.vmem [resolvable:$true] %s430
    %433 = dma.hbm_to_vmem [thread:$0]  %s420, 16, %s431, %s422
    %s434 = smul.addr %s40, 16
    %s435 = scalar_lea.hbm %s1, %s434
    %s436 = scalar_lea.vmem [#allocation2], 26
    %s437 = scalar_lea.sflag [#allocation3], 26
    // Predicated region
    $region106: #{tpu_custom_call.1} parent=1 // pred_check
      _
    $region107: #{tpu_custom_call.1} parent=1 // pred_check_branch
      %439 = sbr.rel target = $region109
    $region108: #{tpu_custom_call.1} parent=1 // pred_region
      %440 = sst [smem:[#allocation10]] [#allocation63]
      %441 = sst [smem:[#allocation11]] [#allocation62]
    $region109: #{tpu_custom_call.1} parent=1 // pred_fallthru
      _
    %443 = shalt.err (0)
    %s445 = sshll.u32 %s436, 4
    %s446 = int_to_ptr.vmem [resolvable:$true] %s445
    %448 = dma.hbm_to_vmem [thread:$0]  %s435, 16, %s446, %s437
    %s449 = smul.addr %s41, 16
    %s450 = scalar_lea.hbm %s1, %s449
    %s451 = scalar_lea.vmem [#allocation2], 27
    %s452 = scalar_lea.sflag [#allocation3], 27
    // Predicated region
    $region110: #{tpu_custom_call.1} parent=1 // pred_check
      _
    $region111: #{tpu_custom_call.1} parent=1 // pred_check_branch
      %454 = sbr.rel target = $region113
    $region112: #{tpu_custom_call.1} parent=1 // pred_region
      %455 = sst [smem:[#allocation10]] [#allocation65]
      %456 = sst [smem:[#allocation11]] [#allocation64]
    $region113: #{tpu_custom_call.1} parent=1 // pred_fallthru
      _
    %458 = shalt.err (0)
    %s460 = sshll.u32 %s451, 4
    %s461 = int_to_ptr.vmem [resolvable:$true] %s460
    %463 = dma.hbm_to_vmem [thread:$0]  %s450, 16, %s461, %s452
    %s464 = smul.addr %s42, 16
    %s465 = scalar_lea.hbm %s1, %s464
    %s466 = scalar_lea.vmem [#allocation2], 28
    %s467 = scalar_lea.sflag [#allocation3], 28
    // Predicated region
    $region114: #{tpu_custom_call.1} parent=1 // pred_check
      _
    $region115: #{tpu_custom_call.1} parent=1 // pred_check_branch
      %469 = sbr.rel target = $region117
    $region116: #{tpu_custom_call.1} parent=1 // pred_region
      %470 = sst [smem:[#allocation10]] [#allocation67]
      %471 = sst [smem:[#allocation11]] [#allocation66]
    $region117: #{tpu_custom_call.1} parent=1 // pred_fallthru
      _
    %473 = shalt.err (0)
    %s475 = sshll.u32 %s466, 4
    %s476 = int_to_ptr.vmem [resolvable:$true] %s475
    %478 = dma.hbm_to_vmem [thread:$0]  %s465, 16, %s476, %s467
    %s479 = smul.addr %s43, 16
    %s480 = scalar_lea.hbm %s1, %s479
    %s481 = scalar_lea.vmem [#allocation2], 29
    %s482 = scalar_lea.sflag [#allocation3], 29
    // Predicated region
    $region118: #{tpu_custom_call.1} parent=1 // pred_check
      _
    $region119: #{tpu_custom_call.1} parent=1 // pred_check_branch
      %484 = sbr.rel target = $region121
    $region120: #{tpu_custom_call.1} parent=1 // pred_region
      %485 = sst [smem:[#allocation10]] [#allocation69]
      %486 = sst [smem:[#allocation11]] [#allocation68]
    $region121: #{tpu_custom_call.1} parent=1 // pred_fallthru
      _
    %488 = shalt.err (0)
    %s490 = sshll.u32 %s481, 4
    %s491 = int_to_ptr.vmem [resolvable:$true] %s490
    %493 = dma.hbm_to_vmem [thread:$0]  %s480, 16, %s491, %s482
    %s494 = smul.addr %s44, 16
    %s495 = scalar_lea.hbm %s1, %s494
    %s496 = scalar_lea.vmem [#allocation2], 30
    %s497 = scalar_lea.sflag [#allocation3], 30
    // Predicated region
    $region122: #{tpu_custom_call.1} parent=1 // pred_check
      _
    $region123: #{tpu_custom_call.1} parent=1 // pred_check_branch
      %499 = sbr.rel target = $region125
    $region124: #{tpu_custom_call.1} parent=1 // pred_region
      %500 = sst [smem:[#allocation10]] [#allocation71]
      %501 = sst [smem:[#allocation11]] [#allocation70]
    $region125: #{tpu_custom_call.1} parent=1 // pred_fallthru
      _
    %503 = shalt.err (0)
    %s505 = sshll.u32 %s496, 4
    %s506 = int_to_ptr.vmem [resolvable:$true] %s505
    %508 = dma.hbm_to_vmem [thread:$0]  %s495, 16, %s506, %s497
    %s509 = smul.addr %s45, 16
    %s510 = scalar_lea.hbm %s1, %s509
    %s511 = scalar_lea.vmem [#allocation2], 31
    %s512 = scalar_lea.sflag [#allocation3], 31
    // Predicated region
    $region126: #{tpu_custom_call.1} parent=1 // pred_check
      _
    $region127: #{tpu_custom_call.1} parent=1 // pred_check_branch
      %514 = sbr.rel target = $region129
    $region128: #{tpu_custom_call.1} parent=1 // pred_region
      %515 = sst [smem:[#allocation10]] [#allocation73]
      %516 = sst [smem:[#allocation11]] [#allocation72]
    $region129: #{tpu_custom_call.1} parent=1 // pred_fallthru
      _
    %518 = shalt.err (0)
    %s520 = sshll.u32 %s511, 4
    %s521 = int_to_ptr.vmem [resolvable:$true] %s520
    %523 = dma.hbm_to_vmem [thread:$0]  %s510, 16, %s521, %s512
    %s524 = smul.u32 1, 1
    %s525 = sshll.u32 %s524, 4
    %526 = dma.done [#allocation3], %s525
    %s527 = sshll.u32 %s524, 4
    %528 = dma.done %s62, %s527
    %s529 = sshll.u32 %s524, 4
    %530 = dma.done %s77, %s529
    %s531 = sshll.u32 %s524, 4
    %532 = dma.done %s92, %s531
    %s533 = sshll.u32 %s524, 4
    %534 = dma.done %s107, %s533
    %s535 = sshll.u32 %s524, 4
    %536 = dma.done %s122, %s535
    %s537 = sshll.u32 %s524, 4
    %538 = dma.done %s137, %s537
    %s539 = sshll.u32 %s524, 4
    %540 = dma.done %s152, %s539
    %s541 = sshll.u32 %s524, 4
    %542 = dma.done %s167, %s541
    %s543 = sshll.u32 %s524, 4
    %544 = dma.done %s182, %s543
    %s545 = sshll.u32 %s524, 4
    %546 = dma.done %s197, %s545
    %s547 = sshll.u32 %s524, 4
    %548 = dma.done %s212, %s547
    %s549 = sshll.u32 %s524, 4
    %550 = dma.done %s227, %s549
    %s551 = sshll.u32 %s524, 4
    %552 = dma.done %s242, %s551
    %s553 = sshll.u32 %s524, 4
    %554 = dma.done %s257, %s553
    %s555 = sshll.u32 %s524, 4
    %556 = dma.done %s272, %s555
    %s557 = sshll.u32 %s524, 4
    %558 = dma.done %s287, %s557
    %s559 = sshll.u32 %s524, 4
    %560 = dma.done %s302, %s559
    %s561 = sshll.u32 %s524, 4
    %562 = dma.done %s317, %s561
    %s563 = sshll.u32 %s524, 4
    %564 = dma.done %s332, %s563
    %s565 = sshll.u32 %s524, 4
    %566 = dma.done %s347, %s565
    %s567 = sshll.u32 %s524, 4
    %568 = dma.done %s362, %s567
    %s569 = sshll.u32 %s524, 4
    %570 = dma.done %s377, %s569
    %s571 = sshll.u32 %s524, 4
    %572 = dma.done %s392, %s571
    %s573 = sshll.u32 %s524, 4
    %574 = dma.done %s407, %s573
    %s575 = sshll.u32 %s524, 4
    %576 = dma.done %s422, %s575
    %s577 = sshll.u32 %s524, 4
    %578 = dma.done %s437, %s577
    %s579 = sshll.u32 %s524, 4
    %580 = dma.done %s452, %s579
    %s581 = sshll.u32 %s524, 4
    %582 = dma.done %s467, %s581
    %s583 = sshll.u32 %s524, 4
    %584 = dma.done %s482, %s583
    %s585 = sshll.u32 %s524, 4
    %586 = dma.done %s497, %s585
    %s587 = sshll.u32 %s524, 4
    %588 = dma.done %s512, %s587
    %v589 = vld [vmem:[#allocation2] sm:$0xff]
    %v590 = vld [vmem:[#allocation2 + $0x8] sm:$0xff]
    %v591 = vld [vmem:[#allocation2 + $0x10] sm:$0xff]
    %v592 = vld [vmem:[#allocation2 + $0x18] sm:$0xff]
    %v593 = vmul.f32 %v589, %v589
    %v594 = vmul.f32 %v590, %v590
    %v595 = vmul.f32 %v591, %v591
    %v596 = vmul.f32 %v592, %v592
    %597 = vadd.xlane.f32.xlu0 %v593
    %v598 = vpop.xlane.xlu0 %597
    %599 = vadd.xlane.f32.xlu0 %v594
    %v600 = vpop.xlane.xlu0 %599
    %601 = vadd.xlane.f32.xlu0 %v595
    %v602 = vpop.xlane.xlu0 %601
    %603 = vadd.xlane.f32.xlu0 %v596
    %v604 = vpop.xlane.xlu0 %603
    %v605 = vrsqrt.pop %v598
    %v606 = vmul.f32 %v598, %v605
    %vm607 = vcmp.eq.f32.partialorder %v598, inf
    %v608 = vsel %vm607, %v598, %v606
    %vm609 = vcmp.eq.f32.partialorder %v598, 0.0
    %v610 = vand.u32 %v598, 2147483648
    %v611 = vsel %vm609, %v610, %v608
    %v612 = vrsqrt.pop %v600
    %v613 = vmul.f32 %v600, %v612
    %vm614 = vcmp.eq.f32.partialorder %v600, inf
    %v615 = vsel %vm614, %v600, %v613
    %vm616 = vcmp.eq.f32.partialorder %v600, 0.0
    %v617 = vand.u32 %v600, 2147483648
    %v618 = vsel %vm616, %v617, %v615
    %v619 = vrsqrt.pop %v602
    %v620 = vmul.f32 %v602, %v619
    %vm621 = vcmp.eq.f32.partialorder %v602, inf
    %v622 = vsel %vm621, %v602, %v620
    %vm623 = vcmp.eq.f32.partialorder %v602, 0.0
    %v624 = vand.u32 %v602, 2147483648
    %v625 = vsel %vm623, %v624, %v622
    %v626 = vrsqrt.pop %v604
    %v627 = vmul.f32 %v604, %v626
    %vm628 = vcmp.eq.f32.partialorder %v604, inf
    %v629 = vsel %vm628, %v604, %v627
    %vm630 = vcmp.eq.f32.partialorder %v604, 0.0
    %v631 = vand.u32 %v604, 2147483648
    %v632 = vsel %vm630, %v631, %v629
    %vm633 = vcmp.gt.f32.partialorder %v611, 1.0
    %vm634 = vcmp.gt.f32.partialorder %v618, 1.0
    %vm635 = vcmp.gt.f32.partialorder %v625, 1.0
    %vm636 = vcmp.gt.f32.partialorder %v632, 1.0
    %v637 = vadd.f32 %v611, 1e-07
    %v638 = vadd.f32 %v618, 1e-07
    %v639 = vadd.f32 %v625, 1e-07
    %v640 = vadd.f32 %v632, 1e-07
    %v641 = vrcp.pop %v637
    %v642 = vmul.f32 1.0, %v641
    %v643 = vrcp.pop %v638
    %v644 = vmul.f32 1.0, %v643
    %v645 = vrcp.pop %v639
    %v646 = vmul.f32 1.0, %v645
    %v647 = vrcp.pop %v640
    %v648 = vmul.f32 1.0, %v647
    %v649 = vsel %vm633, %v642, 1.0
    %v650 = vsel %vm634, %v644, 1.0
    %v651 = vsel %vm635, %v646, 1.0
    %v652 = vsel %vm636, %v648, 1.0
    %v653 = vmul.f32 %v589, %v649
    %v654 = vmul.f32 %v590, %v650
    %v655 = vmul.f32 %v591, %v651
    %v656 = vmul.f32 %v592, %v652
    %v657 = vadd.f32 %v653, %v654
    %v658 = vadd.f32 %v657, %v655
    %v659 = vadd.f32 %v658, %v656
    %v660 = vmul.f32 %v659, 0.25
    %661 = vst [vmem:[#allocation6] sm:$0xff] %v660
    // Predicated region
    $region130: #{tpu_custom_call.1} parent=1 // pred_check
      _
    $region131: #{tpu_custom_call.1} parent=1 // pred_check_branch
      %663 = sbr.rel (0) target = $region133
    $region132: #{tpu_custom_call.1} parent=1 // pred_region
      %s665 = ssub.s32 128, 128
      %666 = vsyncadd [#allocation7], %s665
      %s668 = sshll.u32 [#allocation6], 4
      %s669 = int_to_ptr.vmem [resolvable:$true] %s668
      %671 = dma.vmem_to_hbm [thread:$0]  %s669, 128, %s2, [#allocation7]
    $region133: #{tpu_custom_call.1} parent=1 // pred_fallthru
      _
    // Predicated region
    $region134: #{tpu_custom_call.1} parent=1 // pred_check
      _
    $region135: #{tpu_custom_call.1} parent=1 // pred_check_branch
      %673 = sbr.rel (0) target = $region137
    $region136: #{tpu_custom_call.1} parent=1 // pred_region
      %674 = dma.done [#allocation7], 128
    $region137: #{tpu_custom_call.1} parent=1 // pred_fallthru
      _
    %675 = vsyncpa [#allocation7], 1
  %676 = vsyncmov [#allocation3]
  %s677 = vpop.sfrf %676
  %p678 = scmp.eq.s32.totalorder %s677, 0
  %p679 = pneg %p678
  %681 = shalt.err (%p679)
  %s682 = scalar_lea.sflag [#allocation3], 1
  %683 = vsyncmov %s682
  %s684 = vpop.sfrf %683
  %p685 = scmp.eq.s32.totalorder %s684, 0
  %p686 = pneg %p685
  %688 = shalt.err (%p686)
  %s689 = scalar_lea.sflag [#allocation3], 2
  %690 = vsyncmov %s689
  %s691 = vpop.sfrf %690
  %p692 = scmp.eq.s32.totalorder %s691, 0
  %p693 = pneg %p692
  %695 = shalt.err (%p693)
  %s696 = scalar_lea.sflag [#allocation3], 3
  %697 = vsyncmov %s696
  %s698 = vpop.sfrf %697
  %p699 = scmp.eq.s32.totalorder %s698, 0
  %p700 = pneg %p699
  %702 = shalt.err (%p700)
  %s703 = scalar_lea.sflag [#allocation3], 4
  %704 = vsyncmov %s703
  %s705 = vpop.sfrf %704
  %p706 = scmp.eq.s32.totalorder %s705, 0
  %p707 = pneg %p706
  %709 = shalt.err (%p707)
  %s710 = scalar_lea.sflag [#allocation3], 5
  %711 = vsyncmov %s710
  %s712 = vpop.sfrf %711
  %p713 = scmp.eq.s32.totalorder %s712, 0
  %p714 = pneg %p713
  %716 = shalt.err (%p714)
  %s717 = scalar_lea.sflag [#allocation3], 6
  %718 = vsyncmov %s717
  %s719 = vpop.sfrf %718
  %p720 = scmp.eq.s32.totalorder %s719, 0
  %p721 = pneg %p720
  %723 = shalt.err (%p721)
  %s724 = scalar_lea.sflag [#allocation3], 7
  %725 = vsyncmov %s724
  %s726 = vpop.sfrf %725
  %p727 = scmp.eq.s32.totalorder %s726, 0
  %p728 = pneg %p727
  %730 = shalt.err (%p728)
  %s731 = scalar_lea.sflag [#allocation3], 8
  %732 = vsyncmov %s731
  %s733 = vpop.sfrf %732
  %p734 = scmp.eq.s32.totalorder %s733, 0
  %p735 = pneg %p734
  %737 = shalt.err (%p735)
  %s738 = scalar_lea.sflag [#allocation3], 9
  %739 = vsyncmov %s738
  %s740 = vpop.sfrf %739
  %p741 = scmp.eq.s32.totalorder %s740, 0
  %p742 = pneg %p741
  %744 = shalt.err (%p742)
  %s745 = scalar_lea.sflag [#allocation3], 10
  %746 = vsyncmov %s745
  %s747 = vpop.sfrf %746
  %p748 = scmp.eq.s32.totalorder %s747, 0
  %p749 = pneg %p748
  %751 = shalt.err (%p749)
  %s752 = scalar_lea.sflag [#allocation3], 11
  %753 = vsyncmov %s752
  %s754 = vpop.sfrf %753
  %p755 = scmp.eq.s32.totalorder %s754, 0
  %p756 = pneg %p755
  %758 = shalt.err (%p756)
  %s759 = scalar_lea.sflag [#allocation3], 12
  %760 = vsyncmov %s759
  %s761 = vpop.sfrf %760
  %p762 = scmp.eq.s32.totalorder %s761, 0
  %p763 = pneg %p762
  %765 = shalt.err (%p763)
  %s766 = scalar_lea.sflag [#allocation3], 13
  %767 = vsyncmov %s766
  %s768 = vpop.sfrf %767
  %p769 = scmp.eq.s32.totalorder %s768, 0
  %p770 = pneg %p769
  %772 = shalt.err (%p770)
  %s773 = scalar_lea.sflag [#allocation3], 14
  %774 = vsyncmov %s773
  %s775 = vpop.sfrf %774
  %p776 = scmp.eq.s32.totalorder %s775, 0
  %p777 = pneg %p776
  %779 = shalt.err (%p777)
  %s780 = scalar_lea.sflag [#allocation3], 15
  %781 = vsyncmov %s780
  %s782 = vpop.sfrf %781
  %p783 = scmp.eq.s32.totalorder %s782, 0
  %p784 = pneg %p783
  %786 = shalt.err (%p784)
  %s787 = scalar_lea.sflag [#allocation3], 16
  %788 = vsyncmov %s787
  %s789 = vpop.sfrf %788
  %p790 = scmp.eq.s32.totalorder %s789, 0
  %p791 = pneg %p790
  %793 = shalt.err (%p791)
  %s794 = scalar_lea.sflag [#allocation3], 17
  %795 = vsyncmov %s794
  %s796 = vpop.sfrf %795
  %p797 = scmp.eq.s32.totalorder %s796, 0
  %p798 = pneg %p797
  %800 = shalt.err (%p798)
  %s801 = scalar_lea.sflag [#allocation3], 18
  %802 = vsyncmov %s801
  %s803 = vpop.sfrf %802
  %p804 = scmp.eq.s32.totalorder %s803, 0
  %p805 = pneg %p804
  %807 = shalt.err (%p805)
  %s808 = scalar_lea.sflag [#allocation3], 19
  %809 = vsyncmov %s808
  %s810 = vpop.sfrf %809
  %p811 = scmp.eq.s32.totalorder %s810, 0
  %p812 = pneg %p811
  %814 = shalt.err (%p812)
  %s815 = scalar_lea.sflag [#allocation3], 20
  %816 = vsyncmov %s815
  %s817 = vpop.sfrf %816
  %p818 = scmp.eq.s32.totalorder %s817, 0
  %p819 = pneg %p818
  %821 = shalt.err (%p819)
  %s822 = scalar_lea.sflag [#allocation3], 21
  %823 = vsyncmov %s822
  %s824 = vpop.sfrf %823
  %p825 = scmp.eq.s32.totalorder %s824, 0
  %p826 = pneg %p825
  %828 = shalt.err (%p826)
  %s829 = scalar_lea.sflag [#allocation3], 22
  %830 = vsyncmov %s829
  %s831 = vpop.sfrf %830
  %p832 = scmp.eq.s32.totalorder %s831, 0
  %p833 = pneg %p832
  %835 = shalt.err (%p833)
  %s836 = scalar_lea.sflag [#allocation3], 23
  %837 = vsyncmov %s836
  %s838 = vpop.sfrf %837
  %p839 = scmp.eq.s32.totalorder %s838, 0
  %p840 = pneg %p839
  %842 = shalt.err (%p840)
  %s843 = scalar_lea.sflag [#allocation3], 24
  %844 = vsyncmov %s843
  %s845 = vpop.sfrf %844
  %p846 = scmp.eq.s32.totalorder %s845, 0
  %p847 = pneg %p846
  %849 = shalt.err (%p847)
  %s850 = scalar_lea.sflag [#allocation3], 25
  %851 = vsyncmov %s850
  %s852 = vpop.sfrf %851
  %p853 = scmp.eq.s32.totalorder %s852, 0
  %p854 = pneg %p853
  %856 = shalt.err (%p854)
  %s857 = scalar_lea.sflag [#allocation3], 26
  %858 = vsyncmov %s857
  %s859 = vpop.sfrf %858
  %p860 = scmp.eq.s32.totalorder %s859, 0
  %p861 = pneg %p860
  %863 = shalt.err (%p861)
  %s864 = scalar_lea.sflag [#allocation3], 27
  %865 = vsyncmov %s864
  %s866 = vpop.sfrf %865
  %p867 = scmp.eq.s32.totalorder %s866, 0
  %p868 = pneg %p867
  %870 = shalt.err (%p868)
  %s871 = scalar_lea.sflag [#allocation3], 28
  %872 = vsyncmov %s871
  %s873 = vpop.sfrf %872
  %p874 = scmp.eq.s32.totalorder %s873, 0
  %p875 = pneg %p874
  %877 = shalt.err (%p875)
  %s878 = scalar_lea.sflag [#allocation3], 29
  %879 = vsyncmov %s878
  %s880 = vpop.sfrf %879
  %p881 = scmp.eq.s32.totalorder %s880, 0
  %p882 = pneg %p881
  %884 = shalt.err (%p882)
  %s885 = scalar_lea.sflag [#allocation3], 30
  %886 = vsyncmov %s885
  %s887 = vpop.sfrf %886
  %p888 = scmp.eq.s32.totalorder %s887, 0
  %p889 = pneg %p888
  %891 = shalt.err (%p889)
  %s892 = scalar_lea.sflag [#allocation3], 31
  %893 = vsyncmov %s892
  %s894 = vpop.sfrf %893
  %p895 = scmp.eq.s32.totalorder %s894, 0
  %p896 = pneg %p895
  %898 = shalt.err (%p896)

</llo_original>
